<compile_context>
chip_gen: v5e
topology: v5e:2x2
jax: 0.10.0
libtpu: 0.0.40
codegen_flags: <defaults>
</compile_context>

<pallas_src>
import functools

import jax
import jax.numpy as jnp
from jax.experimental import pallas as pl
from jax.experimental.pallas import tpu as pltpu

IN_FEATURES = 28 * 28
HIDDEN = 512
OUT_FEATURES = 10
OUT_PAD = 128  # lane-dense padded logit width


def mlp_kernel(x_ref, w1_ref, b1_ref, w2_ref, b2_ref, w3_ref, b3_ref, o_ref):
    # f32 -> bf16 cast happens here on the VPU (hidden under MXU), not in XLA.
    x = x_ref[...].astype(jnp.bfloat16)
    # Linear(784 -> 512) + ReLU: bf16 MXU matmul, f32 accumulate / bias / ReLU.
    h1 = jnp.dot(x, w1_ref[...], preferred_element_type=jnp.float32)
    h1 = jnp.maximum(h1 + b1_ref[...], 0.0).astype(jnp.bfloat16)
    # Linear(512 -> 512) + ReLU
    h2 = jnp.dot(h1, w2_ref[...], preferred_element_type=jnp.float32)
    h2 = jnp.maximum(h2 + b2_ref[...], 0.0).astype(jnp.bfloat16)
    # Linear(512 -> 10, zero-padded to 128 lanes) + ReLU (module's Sequential
    # really has nn.ReLU() after the final Linear).
    h3 = jnp.dot(h2, w3_ref[...], preferred_element_type=jnp.float32)
    o_ref[...] = jnp.maximum(h3 + b3_ref[...], 0.0)


def _round_up(n, m):
    return ((n + m - 1) // m) * m


@functools.partial(jax.jit, static_argnames=("tb",))
def neural_network_forward(x, prepared_params, *, tb=1024):
    """x: (B, 28, 28) float32, prepared_params from prepare_params()
    -> logits (B, 10) float32."""
    w1, b1, w2, b2, w3p, b3p = prepared_params
    B = x.shape[0]

    # nn.Flatten: contiguous zero-copy reshape, stays in the XLA wrapper.
    x_flat = x.reshape(B, IN_FEATURES)

    # Batch tile: prefer >= 4 grid steps so both v7x TensorCores see work,
    # rounded up to the 8-sublane granule and capped at tb.
    if B <= 8:
        tb_eff = B  # block equals the full batch dim: always legal
    else:
        tb_eff = min(tb, _round_up(pl.cdiv(B, 4), 8))
    grid = (pl.cdiv(B, tb_eff),)

    # Constant index_map: weight/bias blocks are DMA'd once and stay resident.
    const = lambda a: pl.BlockSpec(a.shape, lambda i: (0,) * a.ndim)

    flops = 2 * B * (IN_FEATURES * HIDDEN + HIDDEN * HIDDEN + HIDDEN * OUT_PAD)
    bytes_accessed = (
        x_flat.size * 4
        + (w1.size + w2.size + w3p.size) * 2
        + (b1.size + b2.size + b3p.size) * 4
        + B * OUT_PAD * 4
    )

    out = pl.pallas_call(
        mlp_kernel,
        out_shape=jax.ShapeDtypeStruct((B, OUT_PAD), jnp.float32),
        grid=grid,
        in_specs=[
            pl.BlockSpec((tb_eff, IN_FEATURES), lambda i: (i, 0)),  # x, pipelined
            const(w1), const(b1),
            const(w2), const(b2),
            const(w3p), const(b3p),
        ],
        out_specs=pl.BlockSpec((tb_eff, OUT_PAD), lambda i: (i, 0)),
        compiler_params=pltpu.CompilerParams(
            dimension_semantics=("parallel",),   # megacore sharding on v7x
            vmem_limit_bytes=32 << 20,           # tight limit; real need is small
        ),
        cost_estimate=pl.CostEstimate(
            flops=flops, transcendentals=0, bytes_accessed=bytes_accessed),
    )(x_flat, w1, b1, w2, b2, w3p, b3p)

    # Drop the zero-padded logit columns (cheap XLA slice).
    return out[:, :OUT_FEATURES]


def init_params(key):
    """PyTorch-style Linear init: U(-1/sqrt(fan_in), 1/sqrt(fan_in)).

    Weights are stored as (in_features, out_features) so the kernel computes
    y = x @ W + b (equivalent to torch's x @ W.T + b with W of shape (out, in)).
    """
    dims = [(IN_FEATURES, HIDDEN), (HIDDEN, HIDDEN), (HIDDEN, OUT_FEATURES)]
    params = []
    for fan_in, fan_out in dims:
        key, kw, kb = jax.random.split(key, 3)
        bound = 1.0 / jnp.sqrt(float(fan_in))
        w = jax.random.uniform(kw, (fan_in, fan_out), jnp.float32, -bound, bound)
        b = jax.random.uniform(kb, (1, fan_out), jnp.float32, -bound, bound)
        params.extend([w, b])
    return tuple(params)


def prepare_params(params, out_pad=OUT_PAD):
    """One-time parameter preprocessing (call at init, NOT per forward):
      * weights cast to bf16 once (halves weight DMA, bf16 MXU rate),
      * last layer zero-padded from 10 to `out_pad` output columns for a
        lane-dense third matmul / output block.
    Biases stay f32 and are added to the f32 accumulator."""
    w1, b1, w2, b2, w3, b3 = params
    w3p = jnp.zeros((w3.shape[0], out_pad), w3.dtype).at[:, : w3.shape[1]].set(w3)
    b3p = jnp.zeros((1, out_pad), b3.dtype).at[:, : b3.shape[1]].set(b3)
    return (
        w1.astype(jnp.bfloat16), b1,
        w2.astype(jnp.bfloat16), b2,
        w3p.astype(jnp.bfloat16), b3p,
    )


def reference_forward(x, params):
    """Pure-JAX reference using the same bf16-weight / f32-accumulate recipe."""
    w1, b1, w2, b2, w3, b3 = params
    h = x.reshape(x.shape[0], -1).astype(jnp.bfloat16)
    h = jnp.dot(h, w1.astype(jnp.bfloat16), preferred_element_type=jnp.float32)
    h = jnp.maximum(h + b1, 0.0).astype(jnp.bfloat16)
    h = jnp.dot(h, w2.astype(jnp.bfloat16), preferred_element_type=jnp.float32)
    h = jnp.maximum(h + b2, 0.0).astype(jnp.bfloat16)
    h = jnp.dot(h, w3.astype(jnp.bfloat16), preferred_element_type=jnp.float32)
    return jnp.maximum(h + b3, 0.0)


if __name__ == "__main__":
    key = jax.random.PRNGKey(0)
    kp, kx = jax.random.split(key)
    params = init_params(kp)
    prepared = prepare_params(params)  # one-time bf16 cast + lane padding

    x = jax.random.uniform(kx, (4, 28, 28), jnp.float32)  # small batch of "images"

    logits = neural_network_forward(x, prepared)
    logits = jax.block_until_ready(logits)

    ref = reference_forward(x, params)
    assert logits.shape == (4, 10)
    assert jnp.allclose(logits, ref, atol=1e-2, rtol=1e-2), (
        jnp.max(jnp.abs(logits - ref)))
    print("KERNEL_OK")
</pallas_src>

<mosaic_0001>
module attributes {stable_mosaic.version = 11 : i64} {
  func.func @mlp_kernel(%arg0: i32, %arg1: memref<4x784xf32, #tpu.memory_space<vmem>>, %arg2: memref<784x512xbf16, #tpu.memory_space<vmem>>, %arg3: memref<1x512xf32, #tpu.memory_space<vmem>>, %arg4: memref<512x512xbf16, #tpu.memory_space<vmem>>, %arg5: memref<1x512xf32, #tpu.memory_space<vmem>>, %arg6: memref<512x128xbf16, #tpu.memory_space<vmem>>, %arg7: memref<1x128xf32, #tpu.memory_space<vmem>>, %arg8: memref<4x128xf32, #tpu.memory_space<vmem>>) attributes {dimension_semantics = [#tpu.dimension_semantics<parallel>], iteration_bounds = array<i64: 1>, scalar_prefetch = 0 : i64, scratch_operands = 0 : i64, tpu.core_type = #tpu.core_type<tc>, window_params = [{transform_indices = @transform_0, window_bounds = array<i64: 4, 784>}, {pipeline_mode = #tpu.pipeline_mode<synchronous>, transform_indices = @transform_1, window_bounds = array<i64: 784, 512>}, {pipeline_mode = #tpu.pipeline_mode<synchronous>, transform_indices = @transform_2, window_bounds = array<i64: 1, 512>}, {pipeline_mode = #tpu.pipeline_mode<synchronous>, transform_indices = @transform_3, window_bounds = array<i64: 512, 512>}, {pipeline_mode = #tpu.pipeline_mode<synchronous>, transform_indices = @transform_4, window_bounds = array<i64: 1, 512>}, {pipeline_mode = #tpu.pipeline_mode<synchronous>, transform_indices = @transform_5, window_bounds = array<i64: 512, 128>}, {pipeline_mode = #tpu.pipeline_mode<synchronous>, transform_indices = @transform_6, window_bounds = array<i64: 1, 128>}, {transform_indices = @transform_7, window_bounds = array<i64: 4, 128>}]} {
    %c0 = arith.constant 0 : index
    %c0_0 = arith.constant 0 : index
    %0 = vector.load %arg1[%c0, %c0_0] : memref<4x784xf32, #tpu.memory_space<vmem>>, vector<4x784xf32>
    %1 = arith.truncf %0 : vector<4x784xf32> to vector<4x784xbf16>
    %c0_1 = arith.constant 0 : index
    %c0_2 = arith.constant 0 : index
    %2 = vector.load %arg2[%c0_1, %c0_2] : memref<784x512xbf16, #tpu.memory_space<vmem>>, vector<784x512xbf16>
    %cst = arith.constant dense<0.000000e+00> : vector<4x512xf32>
    %3 = tpu.matmul %1, %2, %cst {dimension_numbers = #tpu.dot_dimension_numbers<[1], [0], [0], [1], [0, 0, 1, 1], [], []>} : vector<4x784xbf16>, vector<784x512xbf16>, vector<4x512xf32> -> vector<4x512xf32>
    %c0_3 = arith.constant 0 : index
    %c0_4 = arith.constant 0 : index
    %4 = vector.load %arg3[%c0_3, %c0_4] : memref<1x512xf32, #tpu.memory_space<vmem>>, vector<1x512xf32>
    %5 = vector.broadcast %4 : vector<1x512xf32> to vector<4x512xf32>
    %6 = arith.addf %3, %5 : vector<4x512xf32>
    %cst_5 = arith.constant 0.000000e+00 : f32
    %7 = vector.broadcast %cst_5 : f32 to vector<4x512xf32>
    %8 = arith.maximumf %6, %7 : vector<4x512xf32>
    %9 = arith.truncf %8 : vector<4x512xf32> to vector<4x512xbf16>
    %c0_6 = arith.constant 0 : index
    %c0_7 = arith.constant 0 : index
    %10 = vector.load %arg4[%c0_6, %c0_7] : memref<512x512xbf16, #tpu.memory_space<vmem>>, vector<512x512xbf16>
    %cst_8 = arith.constant dense<0.000000e+00> : vector<4x512xf32>
    %11 = tpu.matmul %9, %10, %cst_8 {dimension_numbers = #tpu.dot_dimension_numbers<[1], [0], [0], [1], [0, 0, 1, 1], [], []>} : vector<4x512xbf16>, vector<512x512xbf16>, vector<4x512xf32> -> vector<4x512xf32>
    %c0_9 = arith.constant 0 : index
    %c0_10 = arith.constant 0 : index
    %12 = vector.load %arg5[%c0_9, %c0_10] : memref<1x512xf32, #tpu.memory_space<vmem>>, vector<1x512xf32>
    %13 = vector.broadcast %12 : vector<1x512xf32> to vector<4x512xf32>
    %14 = arith.addf %11, %13 : vector<4x512xf32>
    %cst_11 = arith.constant 0.000000e+00 : f32
    %15 = vector.broadcast %cst_11 : f32 to vector<4x512xf32>
    %16 = arith.maximumf %14, %15 : vector<4x512xf32>
    %17 = arith.truncf %16 : vector<4x512xf32> to vector<4x512xbf16>
    %c0_12 = arith.constant 0 : index
    %c0_13 = arith.constant 0 : index
    %18 = vector.load %arg6[%c0_12, %c0_13] : memref<512x128xbf16, #tpu.memory_space<vmem>>, vector<512x128xbf16>
    %cst_14 = arith.constant dense<0.000000e+00> : vector<4x128xf32>
    %19 = tpu.matmul %17, %18, %cst_14 {dimension_numbers = #tpu.dot_dimension_numbers<[1], [0], [0], [1], [0, 0, 1, 1], [], []>} : vector<4x512xbf16>, vector<512x128xbf16>, vector<4x128xf32> -> vector<4x128xf32>
    %c0_15 = arith.constant 0 : index
    %c0_16 = arith.constant 0 : index
    %20 = vector.load %arg7[%c0_15, %c0_16] : memref<1x128xf32, #tpu.memory_space<vmem>>, vector<1x128xf32>
    %21 = vector.broadcast %20 : vector<1x128xf32> to vector<4x128xf32>
    %22 = arith.addf %19, %21 : vector<4x128xf32>
    %cst_17 = arith.constant 0.000000e+00 : f32
    %23 = vector.broadcast %cst_17 : f32 to vector<4x128xf32>
    %24 = arith.maximumf %22, %23 : vector<4x128xf32>
    %c0_18 = arith.constant 0 : index
    %c0_19 = arith.constant 0 : index
    %25 = vector.load %arg8[%c0_18, %c0_19] : memref<4x128xf32, #tpu.memory_space<vmem>>, vector<4x128xf32>
    tpu.vector_store %arg8[%c0_18, %c0_19], %24 {strides = array<i32>} : memref<4x128xf32, #tpu.memory_space<vmem>>, vector<4x128xf32>,
    return
  }
  func.func @transform_0(%arg0: i32) -> (i32, i32) {
    %c0_i32 = arith.constant 0 : i32
    %c0_i32_0 = arith.constant 0 : i32
    return %arg0, %c0_i32 : i32, i32
  }
  func.func @transform_1(%arg0: i32) -> (i32, i32) {
    %c0_i32 = arith.constant 0 : i32
    %c0_i32_0 = arith.constant 0 : i32
    %c0_i32_1 = arith.constant 0 : i32
    return %c0_i32, %c0_i32_0 : i32, i32
  }
  func.func @transform_2(%arg0: i32) -> (i32, i32) {
    %c0_i32 = arith.constant 0 : i32
    %c0_i32_0 = arith.constant 0 : i32
    %c0_i32_1 = arith.constant 0 : i32
    return %c0_i32, %c0_i32_0 : i32, i32
  }
  func.func @transform_3(%arg0: i32) -> (i32, i32) {
    %c0_i32 = arith.constant 0 : i32
    %c0_i32_0 = arith.constant 0 : i32
    %c0_i32_1 = arith.constant 0 : i32
    return %c0_i32, %c0_i32_0 : i32, i32
  }
  func.func @transform_4(%arg0: i32) -> (i32, i32) {
    %c0_i32 = arith.constant 0 : i32
    %c0_i32_0 = arith.constant 0 : i32
    %c0_i32_1 = arith.constant 0 : i32
    return %c0_i32, %c0_i32_0 : i32, i32
  }
  func.func @transform_5(%arg0: i32) -> (i32, i32) {
    %c0_i32 = arith.constant 0 : i32
    %c0_i32_0 = arith.constant 0 : i32
    %c0_i32_1 = arith.constant 0 : i32
    return %c0_i32, %c0_i32_0 : i32, i32
  }
  func.func @transform_6(%arg0: i32) -> (i32, i32) {
    %c0_i32 = arith.constant 0 : i32
    %c0_i32_0 = arith.constant 0 : i32
    %c0_i32_1 = arith.constant 0 : i32
    return %c0_i32, %c0_i32_0 : i32, i32
  }
  func.func @transform_7(%arg0: i32) -> (i32, i32) {
    %c0_i32 = arith.constant 0 : i32
    %c0_i32_0 = arith.constant 0 : i32
    return %arg0, %c0_i32 : i32, i32
  }
}

</mosaic_0001>

<llo_original>
// kernel: neural_network_forward.1
$region0: #{neural_network_forward.1}
  #allocation0 [shape = 'u32[]', space=smem, size = 0x4, offset = 0x4, fixed_abs, tag = 'smem constant byte address 0x4 - core index']
  #allocation1 [shape = 'u32[72,128]{1,0:T(1,128)}', space=vmem, size = 0x9000, scoped, tag = 'internal scratch']
  %s0 = inlined_call_operand.vmem [shape: f32[4,784], index: 0, kind: input, shape index: {}]
  %s1 = inlined_call_operand.hbm [shape: bf16[784,512], index: 1, kind: input, shape index: {}]
  %s2 = inlined_call_operand.vmem [shape: f32[1,512], index: 2, kind: input, shape index: {}]
  %s3 = inlined_call_operand.hbm [shape: bf16[512,512], index: 3, kind: input, shape index: {}]
  %s4 = inlined_call_operand.vmem [shape: f32[1,512], index: 4, kind: input, shape index: {}]
  %s5 = inlined_call_operand.vmem [shape: bf16[512,128], index: 5, kind: input, shape index: {}]
  %s6 = inlined_call_operand.vmem [shape: f32[1,128], index: 6, kind: input, shape index: {}]
  %s7 = inlined_call_operand.hbm [shape: f32[4,128], index: 7, kind: output, shape index: {}]
  %s8 = sld [smem:[#allocation0]]
  $region46: #{neural_network_forward.1} parent=0
    _
  %s10 = ssub.s32 1, %s8
  %s11 = scalar_select 0, %s10, %s8
  $region1: #{neural_network_forward.1} parent=0
    #allocation2 [shape = 'u8[802816]{0}', space=vmem, size = 0xc4000, scoped, tag = 'input window, operand 1, single buffered']
    #allocation3 [shape = 's32[1]{0}', space=sflag, size = 0x4, scoped, tag = 'scoped memory for neural_network_forward.1']
    #allocation4 [shape = 's32[1]{0}', space=sflag, size = 0x4, scoped, tag = 'scoped memory for neural_network_forward.1']
    #allocation5 [shape = 'u8[524288]{0}', space=vmem, size = 0x80000, scoped, tag = 'input window, operand 3, single buffered']
    #allocation6 [shape = 's32[1]{0}', space=sflag, size = 0x4, scoped, tag = 'scoped memory for neural_network_forward.1']
    #allocation7 [shape = 'u8[2048]{0}', space=vmem, size = 0x800, scoped, tag = 'output window, operand 0, single buffered']
    %12 = vsyncpa [#allocation3], 0
    %13 = vsyncpa [#allocation6], 0
    %14 = vsyncpa [#allocation4], 0
    // Predicated region
    $region2: #{neural_network_forward.1} parent=1 // pred_check
      _
    $region3: #{neural_network_forward.1} parent=1 // pred_check_branch
      %16 = sbr.rel (0) target = $region5
    $region4: #{neural_network_forward.1} parent=1 // pred_region
      _
    $region5: #{neural_network_forward.1} parent=1 // pred_fallthru
      _
    // Predicated region
    $region6: #{neural_network_forward.1} parent=1 // pred_check
      _
    $region7: #{neural_network_forward.1} parent=1 // pred_check_branch
      %18 = sbr.rel (0) target = $region9
    $region8: #{neural_network_forward.1} parent=1 // pred_region
      %20 = vsyncadd [#allocation3], 0
      %s21 = sshll.u32 %s1, 4
      %s22 = int_to_ptr.hbm [resolvable:$true] %s21
      %s23 = sshll.u32 [#allocation2], 4
      %s24 = int_to_ptr.vmem [resolvable:$true] %s23
      %29 = dma.hbm_to_vmem [thread:$0]  %s22, 25088, %s24, [#allocation3], 256, 256, 16
    $region9: #{neural_network_forward.1} parent=1 // pred_fallthru
      _
    // Predicated region
    $region10: #{neural_network_forward.1} parent=1 // pred_check
      _
    $region11: #{neural_network_forward.1} parent=1 // pred_check_branch
      %31 = sbr.rel (0) target = $region13
    $region12: #{neural_network_forward.1} parent=1 // pred_region
      _
    $region13: #{neural_network_forward.1} parent=1 // pred_fallthru
      _
    // Predicated region
    $region14: #{neural_network_forward.1} parent=1 // pred_check
      _
    $region15: #{neural_network_forward.1} parent=1 // pred_check_branch
      %33 = sbr.rel (0) target = $region17
    $region16: #{neural_network_forward.1} parent=1 // pred_region
      %35 = vsyncadd [#allocation6], 0
      %s36 = sshll.u32 %s3, 4
      %s37 = int_to_ptr.hbm [resolvable:$true] %s36
      %s38 = sshll.u32 [#allocation5], 4
      %s39 = int_to_ptr.vmem [resolvable:$true] %s38
      %44 = dma.hbm_to_vmem [thread:$0]  %s37, 16384, %s39, [#allocation6], 256, 256, 16
    $region17: #{neural_network_forward.1} parent=1 // pred_fallthru
      _
    // Predicated region
    $region18: #{neural_network_forward.1} parent=1 // pred_check
      _
    $region19: #{neural_network_forward.1} parent=1 // pred_check_branch
      %46 = sbr.rel (0) target = $region21
    $region20: #{neural_network_forward.1} parent=1 // pred_region
      _
    $region21: #{neural_network_forward.1} parent=1 // pred_fallthru
      _
    // Predicated region
    $region22: #{neural_network_forward.1} parent=1 // pred_check
      _
    $region23: #{neural_network_forward.1} parent=1 // pred_check_branch
      %48 = sbr.rel (0) target = $region25
    $region24: #{neural_network_forward.1} parent=1 // pred_region
      _
    $region25: #{neural_network_forward.1} parent=1 // pred_fallthru
      _
    // Predicated region
    $region26: #{neural_network_forward.1} parent=1 // pred_check
      _
    $region27: #{neural_network_forward.1} parent=1 // pred_check_branch
      %50 = sbr.rel (0) target = $region29
    $region28: #{neural_network_forward.1} parent=1 // pred_region
      _
    $region29: #{neural_network_forward.1} parent=1 // pred_fallthru
      _
    // Predicated region
    $region30: #{neural_network_forward.1} parent=1 // pred_check
      _
    $region31: #{neural_network_forward.1} parent=1 // pred_check_branch
      %52 = sbr.rel (0) target = $region33
    $region32: #{neural_network_forward.1} parent=1 // pred_region
      %54 = dma.done [#allocation3], 25088
    $region33: #{neural_network_forward.1} parent=1 // pred_fallthru
      _
    // Predicated region
    $region34: #{neural_network_forward.1} parent=1 // pred_check
      _
    $region35: #{neural_network_forward.1} parent=1 // pred_check_branch
      %56 = sbr.rel (0) target = $region37
    $region36: #{neural_network_forward.1} parent=1 // pred_region
      %58 = dma.done [#allocation6], 16384
    $region37: #{neural_network_forward.1} parent=1 // pred_fallthru
      _
    %v60 = vld [vmem:[%s0] sm:$0xff]
    %v61 = vld [vmem:[%s0 + $0x8] sm:$0xff]
    %v62 = vld [vmem:[%s0 + $0x10] sm:$0xff]
    %v63 = vld [vmem:[%s0 + $0x18] sm:$0xf]
    %68 = vst [vmem:[#allocation1] ss:$2 sm:$0xff] %v60
    %s69 = scalar_lea.vmem [#allocation1], 16
    %70 = vst [vmem:[%s69] ss:$2 sm:$0xff] %v61
    %s71 = scalar_lea.vmem [#allocation1], 32
    %72 = vst [vmem:[%s71] ss:$2 sm:$0xff] %v62
    %s73 = scalar_lea.vmem [#allocation1], 48
    %74 = vst [vmem:[%s73] ss:$2 sm:$0xff] %v63
    %v75 = vld.sshfl [vmem:[#allocation1] sm:$0xff pattern:$0x75316420]
    %v76 = vld.sshfl [vmem:[#allocation1 + $0x8] sm:$0xff pattern:$0x75316420]
    %v77 = vld.sshfl [vmem:[#allocation1 + $0x10] sm:$0xff pattern:$0x75316420]
    %v78 = vld.sshfl [vmem:[#allocation1 + $0x18] sm:$0xff pattern:$0x75316420]
    %v79 = vld.sshfl [vmem:[#allocation1 + $0x20] sm:$0xff pattern:$0x75316420]
    %v80 = vld.sshfl [vmem:[#allocation1 + $0x28] sm:$0xff pattern:$0x75316420]
    %v81 = vld.sshfl [vmem:[#allocation1 + $0x30] sm:$0xff pattern:$0x75316420]
    %v89 = vpack.c.bf16 %v75, %v75
    %v90 = vpack.c.bf16 %v76, %v76
    %v91 = vpack.c.bf16 %v77, %v77
    %v92 = vpack.c.bf16 %v78, %v78
    %v93 = vpack.c.bf16 %v79, %v79
    %v94 = vpack.c.bf16 %v80, %v80
    %v95 = vpack.c.bf16 %v81, %v81
    %v96 = vld [vmem:[#allocation2] sm:$0xff]
    %v97 = vld [vmem:[#allocation2 + $0x8] sm:$0xff]
    %v98 = vld [vmem:[#allocation2 + $0x10] sm:$0xff]
    %v99 = vld [vmem:[#allocation2 + $0x18] sm:$0xff]
    %v100 = vld [vmem:[#allocation2 + $0x20] sm:$0xff]
    %v101 = vld [vmem:[#allocation2 + $0x28] sm:$0xff]
    %v102 = vld [vmem:[#allocation2 + $0x30] sm:$0xff]
    %v103 = vld [vmem:[#allocation2 + $0x38] sm:$0xff]
    %v104 = vld [vmem:[#allocation2 + $0x40] sm:$0xff]
    %v105 = vld [vmem:[#allocation2 + $0x48] sm:$0xff]
    %v106 = vld [vmem:[#allocation2 + $0x50] sm:$0xff]
    %v107 = vld [vmem:[#allocation2 + $0x58] sm:$0xff]
    %v108 = vld [vmem:[#allocation2 + $0x60] sm:$0xff]
    %v109 = vld [vmem:[#allocation2 + $0x68] sm:$0xff]
    %v110 = vld [vmem:[#allocation2 + $0x70] sm:$0xff]
    %v111 = vld [vmem:[#allocation2 + $0x78] sm:$0xff]
    %v112 = vld [vmem:[#allocation2 + $0x80] sm:$0xff]
    %v113 = vld [vmem:[#allocation2 + $0x88] sm:$0xff]
    %v114 = vld [vmem:[#allocation2 + $0x90] sm:$0xff]
    %v115 = vld [vmem:[#allocation2 + $0x98] sm:$0xff]
    %v116 = vld [vmem:[#allocation2 + $0xa0] sm:$0xff]
    %v117 = vld [vmem:[#allocation2 + $0xa8] sm:$0xff]
    %v118 = vld [vmem:[#allocation2 + $0xb0] sm:$0xff]
    %v119 = vld [vmem:[#allocation2 + $0xb8] sm:$0xff]
    %v120 = vld [vmem:[#allocation2 + $0xc0] sm:$0xff]
    %v121 = vld [vmem:[#allocation2 + $0xc8] sm:$0xff]
    %v122 = vld [vmem:[#allocation2 + $0xd0] sm:$0xff]
    %v123 = vld [vmem:[#allocation2 + $0xd8] sm:$0xff]
    %v124 = vld [vmem:[#allocation2 + $0xe0] sm:$0xff]
    %v125 = vld [vmem:[#allocation2 + $0xe8] sm:$0xff]
    %v126 = vld [vmem:[#allocation2 + $0xf0] sm:$0xff]
    %v127 = vld [vmem:[#allocation2 + $0xf8] sm:$0xff]
    %v128 = vld [vmem:[#allocation2 + $0x100] sm:$0xff]
    %v129 = vld [vmem:[#allocation2 + $0x108] sm:$0xff]
    %v130 = vld [vmem:[#allocation2 + $0x110] sm:$0xff]
    %v131 = vld [vmem:[#allocation2 + $0x118] sm:$0xff]
    %v132 = vld [vmem:[#allocation2 + $0x120] sm:$0xff]
    %v133 = vld [vmem:[#allocation2 + $0x128] sm:$0xff]
    %v134 = vld [vmem:[#allocation2 + $0x130] sm:$0xff]
    %v135 = vld [vmem:[#allocation2 + $0x138] sm:$0xff]
    %v136 = vld [vmem:[#allocation2 + $0x140] sm:$0xff]
    %v137 = vld [vmem:[#allocation2 + $0x148] sm:$0xff]
    %v138 = vld [vmem:[#allocation2 + $0x150] sm:$0xff]
    %v139 = vld [vmem:[#allocation2 + $0x158] sm:$0xff]
    %v140 = vld [vmem:[#allocation2 + $0x160] sm:$0xff]
    %v141 = vld [vmem:[#allocation2 + $0x168] sm:$0xff]
    %v142 = vld [vmem:[#allocation2 + $0x170] sm:$0xff]
    %v143 = vld [vmem:[#allocation2 + $0x178] sm:$0xff]
    %v144 = vld [vmem:[#allocation2 + $0x180] sm:$0xff]
    %v145 = vld [vmem:[#allocation2 + $0x188] sm:$0xff]
    %v146 = vld [vmem:[#allocation2 + $0x190] sm:$0xff]
    %v147 = vld [vmem:[#allocation2 + $0x198] sm:$0xff]
    %v148 = vld [vmem:[#allocation2 + $0x1a0] sm:$0xff]
    %v149 = vld [vmem:[#allocation2 + $0x1a8] sm:$0xff]
    %v150 = vld [vmem:[#allocation2 + $0x1b0] sm:$0xff]
    %v151 = vld [vmem:[#allocation2 + $0x1b8] sm:$0xff]
    %v152 = vld [vmem:[#allocation2 + $0x1c0] sm:$0xff]
    %v153 = vld [vmem:[#allocation2 + $0x1c8] sm:$0xff]
    %v154 = vld [vmem:[#allocation2 + $0x1d0] sm:$0xff]
    %v155 = vld [vmem:[#allocation2 + $0x1d8] sm:$0xff]
    %v156 = vld [vmem:[#allocation2 + $0x1e0] sm:$0xff]
    %v157 = vld [vmem:[#allocation2 + $0x1e8] sm:$0xff]
    %v158 = vld [vmem:[#allocation2 + $0x1f0] sm:$0xff]
    %v159 = vld [vmem:[#allocation2 + $0x1f8] sm:$0xff]
    %v160 = vld [vmem:[#allocation2 + $0x200] sm:$0xff]
    %v161 = vld [vmem:[#allocation2 + $0x208] sm:$0xff]
    %v162 = vld [vmem:[#allocation2 + $0x210] sm:$0xff]
    %v163 = vld [vmem:[#allocation2 + $0x218] sm:$0xff]
    %v164 = vld [vmem:[#allocation2 + $0x220] sm:$0xff]
    %v165 = vld [vmem:[#allocation2 + $0x228] sm:$0xff]
    %v166 = vld [vmem:[#allocation2 + $0x230] sm:$0xff]
    %v167 = vld [vmem:[#allocation2 + $0x238] sm:$0xff]
    %v168 = vld [vmem:[#allocation2 + $0x240] sm:$0xff]
    %v169 = vld [vmem:[#allocation2 + $0x248] sm:$0xff]
    %v170 = vld [vmem:[#allocation2 + $0x250] sm:$0xff]
    %v171 = vld [vmem:[#allocation2 + $0x258] sm:$0xff]
    %v172 = vld [vmem:[#allocation2 + $0x260] sm:$0xff]
    %v173 = vld [vmem:[#allocation2 + $0x268] sm:$0xff]
    %v174 = vld [vmem:[#allocation2 + $0x270] sm:$0xff]
    %v175 = vld [vmem:[#allocation2 + $0x278] sm:$0xff]
    %v176 = vld [vmem:[#allocation2 + $0x280] sm:$0xff]
    %v177 = vld [vmem:[#allocation2 + $0x288] sm:$0xff]
    %v178 = vld [vmem:[#allocation2 + $0x290] sm:$0xff]
    %v179 = vld [vmem:[#allocation2 + $0x298] sm:$0xff]
    %v180 = vld [vmem:[#allocation2 + $0x2a0] sm:$0xff]
    %v181 = vld [vmem:[#allocation2 + $0x2a8] sm:$0xff]
    %v182 = vld [vmem:[#allocation2 + $0x2b0] sm:$0xff]
    %v183 = vld [vmem:[#allocation2 + $0x2b8] sm:$0xff]
    %v184 = vld [vmem:[#allocation2 + $0x2c0] sm:$0xff]
    %v185 = vld [vmem:[#allocation2 + $0x2c8] sm:$0xff]
    %v186 = vld [vmem:[#allocation2 + $0x2d0] sm:$0xff]
    %v187 = vld [vmem:[#allocation2 + $0x2d8] sm:$0xff]
    %v188 = vld [vmem:[#allocation2 + $0x2e0] sm:$0xff]
    %v189 = vld [vmem:[#allocation2 + $0x2e8] sm:$0xff]
    %v190 = vld [vmem:[#allocation2 + $0x2f0] sm:$0xff]
    %v191 = vld [vmem:[#allocation2 + $0x2f8] sm:$0xff]
    %v192 = vld [vmem:[#allocation2 + $0x300] sm:$0xff]
    %v193 = vld [vmem:[#allocation2 + $0x308] sm:$0xff]
    %v194 = vld [vmem:[#allocation2 + $0x310] sm:$0xff]
    %v195 = vld [vmem:[#allocation2 + $0x318] sm:$0xff]
    %v196 = vld [vmem:[#allocation2 + $0x320] sm:$0xff]
    %v197 = vld [vmem:[#allocation2 + $0x328] sm:$0xff]
    %v198 = vld [vmem:[#allocation2 + $0x330] sm:$0xff]
    %v199 = vld [vmem:[#allocation2 + $0x338] sm:$0xff]
    %v200 = vld [vmem:[#allocation2 + $0x340] sm:$0xff]
    %v201 = vld [vmem:[#allocation2 + $0x348] sm:$0xff]
    %v202 = vld [vmem:[#allocation2 + $0x350] sm:$0xff]
    %v203 = vld [vmem:[#allocation2 + $0x358] sm:$0xff]
    %v204 = vld [vmem:[#allocation2 + $0x360] sm:$0xff]
    %v205 = vld [vmem:[#allocation2 + $0x368] sm:$0xff]
    %v206 = vld [vmem:[#allocation2 + $0x370] sm:$0xff]
    %v207 = vld [vmem:[#allocation2 + $0x378] sm:$0xff]
    %v208 = vld [vmem:[#allocation2 + $0x380] sm:$0xff]
    %v209 = vld [vmem:[#allocation2 + $0x388] sm:$0xff]
    %v210 = vld [vmem:[#allocation2 + $0x390] sm:$0xff]
    %v211 = vld [vmem:[#allocation2 + $0x398] sm:$0xff]
    %v212 = vld [vmem:[#allocation2 + $0x3a0] sm:$0xff]
    %v213 = vld [vmem:[#allocation2 + $0x3a8] sm:$0xff]
    %v214 = vld [vmem:[#allocation2 + $0x3b0] sm:$0xff]
    %v215 = vld [vmem:[#allocation2 + $0x3b8] sm:$0xff]
    %v216 = vld [vmem:[#allocation2 + $0x3c0] sm:$0xff]
    %v217 = vld [vmem:[#allocation2 + $0x3c8] sm:$0xff]
    %v218 = vld [vmem:[#allocation2 + $0x3d0] sm:$0xff]
    %v219 = vld [vmem:[#allocation2 + $0x3d8] sm:$0xff]
    %v220 = vld [vmem:[#allocation2 + $0x3e0] sm:$0xff]
    %v221 = vld [vmem:[#allocation2 + $0x3e8] sm:$0xff]
    %v222 = vld [vmem:[#allocation2 + $0x3f0] sm:$0xff]
    %v223 = vld [vmem:[#allocation2 + $0x3f8] sm:$0xff]
    %v224 = vld [vmem:[#allocation2 + $0x400] sm:$0xff]
    %v225 = vld [vmem:[#allocation2 + $0x408] sm:$0xff]
    %v226 = vld [vmem:[#allocation2 + $0x410] sm:$0xff]
    %v227 = vld [vmem:[#allocation2 + $0x418] sm:$0xff]
    %v228 = vld [vmem:[#allocation2 + $0x420] sm:$0xff]
    %v229 = vld [vmem:[#allocation2 + $0x428] sm:$0xff]
    %v230 = vld [vmem:[#allocation2 + $0x430] sm:$0xff]
    %v231 = vld [vmem:[#allocation2 + $0x438] sm:$0xff]
    %v232 = vld [vmem:[#allocation2 + $0x440] sm:$0xff]
    %v233 = vld [vmem:[#allocation2 + $0x448] sm:$0xff]
    %v234 = vld [vmem:[#allocation2 + $0x450] sm:$0xff]
    %v235 = vld [vmem:[#allocation2 + $0x458] sm:$0xff]
    %v236 = vld [vmem:[#allocation2 + $0x460] sm:$0xff]
    %v237 = vld [vmem:[#allocation2 + $0x468] sm:$0xff]
    %v238 = vld [vmem:[#allocation2 + $0x470] sm:$0xff]
    %v239 = vld [vmem:[#allocation2 + $0x478] sm:$0xff]
    %v240 = vld [vmem:[#allocation2 + $0x480] sm:$0xff]
    %v241 = vld [vmem:[#allocation2 + $0x488] sm:$0xff]
    %v242 = vld [vmem:[#allocation2 + $0x490] sm:$0xff]
    %v243 = vld [vmem:[#allocation2 + $0x498] sm:$0xff]
    %v244 = vld [vmem:[#allocation2 + $0x4a0] sm:$0xff]
    %v245 = vld [vmem:[#allocation2 + $0x4a8] sm:$0xff]
    %v246 = vld [vmem:[#allocation2 + $0x4b0] sm:$0xff]
    %v247 = vld [vmem:[#allocation2 + $0x4b8] sm:$0xff]
    %v248 = vld [vmem:[#allocation2 + $0x4c0] sm:$0xff]
    %v249 = vld [vmem:[#allocation2 + $0x4c8] sm:$0xff]
    %v250 = vld [vmem:[#allocation2 + $0x4d0] sm:$0xff]
    %v251 = vld [vmem:[#allocation2 + $0x4d8] sm:$0xff]
    %v252 = vld [vmem:[#allocation2 + $0x4e0] sm:$0xff]
    %v253 = vld [vmem:[#allocation2 + $0x4e8] sm:$0xff]
    %v254 = vld [vmem:[#allocation2 + $0x4f0] sm:$0xff]
    %v255 = vld [vmem:[#allocation2 + $0x4f8] sm:$0xff]
    %v256 = vld [vmem:[#allocation2 + $0x500] sm:$0xff]
    %v257 = vld [vmem:[#allocation2 + $0x508] sm:$0xff]
    %v258 = vld [vmem:[#allocation2 + $0x510] sm:$0xff]
    %v259 = vld [vmem:[#allocation2 + $0x518] sm:$0xff]
    %v260 = vld [vmem:[#allocation2 + $0x520] sm:$0xff]
    %v261 = vld [vmem:[#allocation2 + $0x528] sm:$0xff]
    %v262 = vld [vmem:[#allocation2 + $0x530] sm:$0xff]
    %v263 = vld [vmem:[#allocation2 + $0x538] sm:$0xff]
    %v264 = vld [vmem:[#allocation2 + $0x540] sm:$0xff]
    %v265 = vld [vmem:[#allocation2 + $0x548] sm:$0xff]
    %v266 = vld [vmem:[#allocation2 + $0x550] sm:$0xff]
    %v267 = vld [vmem:[#allocation2 + $0x558] sm:$0xff]
    %v268 = vld [vmem:[#allocation2 + $0x560] sm:$0xff]
    %v269 = vld [vmem:[#allocation2 + $0x568] sm:$0xff]
    %v270 = vld [vmem:[#allocation2 + $0x570] sm:$0xff]
    %v271 = vld [vmem:[#allocation2 + $0x578] sm:$0xff]
    %v272 = vld [vmem:[#allocation2 + $0x580] sm:$0xff]
    %v273 = vld [vmem:[#allocation2 + $0x588] sm:$0xff]
    %v274 = vld [vmem:[#allocation2 + $0x590] sm:$0xff]
    %v275 = vld [vmem:[#allocation2 + $0x598] sm:$0xff]
    %v276 = vld [vmem:[#allocation2 + $0x5a0] sm:$0xff]
    %v277 = vld [vmem:[#allocation2 + $0x5a8] sm:$0xff]
    %v278 = vld [vmem:[#allocation2 + $0x5b0] sm:$0xff]
    %v279 = vld [vmem:[#allocation2 + $0x5b8] sm:$0xff]
    %v280 = vld [vmem:[#allocation2 + $0x5c0] sm:$0xff]
    %v281 = vld [vmem:[#allocation2 + $0x5c8] sm:$0xff]
    %v282 = vld [vmem:[#allocation2 + $0x5d0] sm:$0xff]
    %v283 = vld [vmem:[#allocation2 + $0x5d8] sm:$0xff]
    %v284 = vld [vmem:[#allocation2 + $0x5e0] sm:$0xff]
    %v285 = vld [vmem:[#allocation2 + $0x5e8] sm:$0xff]
    %v286 = vld [vmem:[#allocation2 + $0x5f0] sm:$0xff]
    %v287 = vld [vmem:[#allocation2 + $0x5f8] sm:$0xff]
    %v288 = vld [vmem:[#allocation2 + $0x600] sm:$0xff]
    %v289 = vld [vmem:[#allocation2 + $0x608] sm:$0xff]
    %v290 = vld [vmem:[#allocation2 + $0x610] sm:$0xff]
    %v291 = vld [vmem:[#allocation2 + $0x618] sm:$0xff]
    %v292 = vld [vmem:[%s2] sm:$0xf]
    %v294 = vperm.slane %v292, 0
    %v295 = vperm.slane %v292, 1
    %v296 = vperm.slane %v292, 2
    %v297 = vperm.slane %v292, 3
    %v498 = vunpack.c.l.b16 %v96
    %v499 = vunpack.c.h.b16 %v96
    %v500 = vunpack.c.l.b16 %v97
    %v501 = vunpack.c.h.b16 %v97
    %v502 = vunpack.c.l.b16 %v98
    %v503 = vunpack.c.h.b16 %v98
    %v504 = vunpack.c.l.b16 %v99
    %v505 = vunpack.c.h.b16 %v99
    %v506 = vunpack.c.l.b16 %v100
    %v507 = vunpack.c.h.b16 %v100
    %v508 = vunpack.c.l.b16 %v101
    %v509 = vunpack.c.h.b16 %v101
    %v510 = vunpack.c.l.b16 %v102
    %v511 = vunpack.c.h.b16 %v102
    %v512 = vunpack.c.l.b16 %v103
    %v513 = vunpack.c.h.b16 %v103
    %v514 = vunpack.c.l.b16 %v104
    %v515 = vunpack.c.h.b16 %v104
    %v516 = vunpack.c.l.b16 %v105
    %v517 = vunpack.c.h.b16 %v105
    %v518 = vunpack.c.l.b16 %v106
    %v519 = vunpack.c.h.b16 %v106
    %v520 = vunpack.c.l.b16 %v107
    %v521 = vunpack.c.h.b16 %v107
    %v522 = vunpack.c.l.b16 %v108
    %v523 = vunpack.c.h.b16 %v108
    %v524 = vunpack.c.l.b16 %v109
    %v525 = vunpack.c.h.b16 %v109
    %v526 = vunpack.c.l.b16 %v110
    %v527 = vunpack.c.h.b16 %v110
    %v528 = vunpack.c.l.b16 %v111
    %v529 = vunpack.c.h.b16 %v111
    %v530 = vunpack.c.l.b16 %v112
    %v531 = vunpack.c.h.b16 %v112
    %v532 = vunpack.c.l.b16 %v113
    %v533 = vunpack.c.h.b16 %v113
    %v534 = vunpack.c.l.b16 %v114
    %v535 = vunpack.c.h.b16 %v114
    %v536 = vunpack.c.l.b16 %v115
    %v537 = vunpack.c.h.b16 %v115
    %v538 = vunpack.c.l.b16 %v116
    %v539 = vunpack.c.h.b16 %v116
    %v540 = vunpack.c.l.b16 %v117
    %v541 = vunpack.c.h.b16 %v117
    %v542 = vunpack.c.l.b16 %v118
    %v543 = vunpack.c.h.b16 %v118
    %v544 = vunpack.c.l.b16 %v119
    %v545 = vunpack.c.h.b16 %v119
    %v546 = vunpack.c.l.b16 %v120
    %v547 = vunpack.c.h.b16 %v120
    %v548 = vunpack.c.l.b16 %v121
    %v549 = vunpack.c.h.b16 %v121
    %v550 = vunpack.c.l.b16 %v122
    %v551 = vunpack.c.h.b16 %v122
    %v552 = vunpack.c.l.b16 %v123
    %v553 = vunpack.c.h.b16 %v123
    %v554 = vunpack.c.l.b16 %v124
    %v555 = vunpack.c.h.b16 %v124
    %v556 = vunpack.c.l.b16 %v125
    %v557 = vunpack.c.h.b16 %v125
    %v558 = vunpack.c.l.b16 %v126
    %v559 = vunpack.c.h.b16 %v126
    %v560 = vunpack.c.l.b16 %v127
    %v561 = vunpack.c.h.b16 %v127
    %v562 = vunpack.c.l.b16 %v128
    %v563 = vunpack.c.h.b16 %v128
    %v564 = vunpack.c.l.b16 %v129
    %v565 = vunpack.c.h.b16 %v129
    %v566 = vunpack.c.l.b16 %v130
    %v567 = vunpack.c.h.b16 %v130
    %v568 = vunpack.c.l.b16 %v131
    %v569 = vunpack.c.h.b16 %v131
    %v570 = vunpack.c.l.b16 %v132
    %v571 = vunpack.c.h.b16 %v132
    %v572 = vunpack.c.l.b16 %v133
    %v573 = vunpack.c.h.b16 %v133
    %v574 = vunpack.c.l.b16 %v134
    %v575 = vunpack.c.h.b16 %v134
    %v576 = vunpack.c.l.b16 %v135
    %v577 = vunpack.c.h.b16 %v135
    %v578 = vunpack.c.l.b16 %v136
    %v579 = vunpack.c.h.b16 %v136
    %v580 = vunpack.c.l.b16 %v137
    %v581 = vunpack.c.h.b16 %v137
    %v582 = vunpack.c.l.b16 %v138
    %v583 = vunpack.c.h.b16 %v138
    %v584 = vunpack.c.l.b16 %v139
    %v585 = vunpack.c.h.b16 %v139
    %v586 = vunpack.c.l.b16 %v140
    %v587 = vunpack.c.h.b16 %v140
    %v588 = vunpack.c.l.b16 %v141
    %v589 = vunpack.c.h.b16 %v141
    %v590 = vunpack.c.l.b16 %v142
    %v591 = vunpack.c.h.b16 %v142
    %v592 = vunpack.c.l.b16 %v143
    %v593 = vunpack.c.h.b16 %v143
    %v594 = vunpack.c.l.b16 %v144
    %v595 = vunpack.c.h.b16 %v144
    %v596 = vunpack.c.l.b16 %v145
    %v597 = vunpack.c.h.b16 %v145
    %v598 = vunpack.c.l.b16 %v146
    %v599 = vunpack.c.h.b16 %v146
    %v600 = vunpack.c.l.b16 %v147
    %v601 = vunpack.c.h.b16 %v147
    %v602 = vunpack.c.l.b16 %v148
    %v603 = vunpack.c.h.b16 %v148
    %v604 = vunpack.c.l.b16 %v149
    %v605 = vunpack.c.h.b16 %v149
    %v606 = vunpack.c.l.b16 %v150
    %v607 = vunpack.c.h.b16 %v150
    %v608 = vunpack.c.l.b16 %v151
    %v609 = vunpack.c.h.b16 %v151
    %v610 = vunpack.c.l.b16 %v152
    %v611 = vunpack.c.h.b16 %v152
    %v612 = vunpack.c.l.b16 %v153
    %v613 = vunpack.c.h.b16 %v153
    %v614 = vunpack.c.l.b16 %v154
    %v615 = vunpack.c.h.b16 %v154
    %v616 = vunpack.c.l.b16 %v155
    %v617 = vunpack.c.h.b16 %v155
    %v618 = vunpack.c.l.b16 %v156
    %v619 = vunpack.c.h.b16 %v156
    %v620 = vunpack.c.l.b16 %v157
    %v621 = vunpack.c.h.b16 %v157
    %v622 = vunpack.c.l.b16 %v158
    %v623 = vunpack.c.h.b16 %v158
    %v624 = vunpack.c.l.b16 %v159
    %v625 = vunpack.c.h.b16 %v159
    %v626 = vunpack.c.l.b16 %v160
    %v627 = vunpack.c.h.b16 %v160
    %v628 = vunpack.c.l.b16 %v161
    %v629 = vunpack.c.h.b16 %v161
    %v630 = vunpack.c.l.b16 %v162
    %v631 = vunpack.c.h.b16 %v162
    %v632 = vunpack.c.l.b16 %v163
    %v633 = vunpack.c.h.b16 %v163
    %v634 = vunpack.c.l.b16 %v164
    %v635 = vunpack.c.h.b16 %v164
    %v636 = vunpack.c.l.b16 %v165
    %v637 = vunpack.c.h.b16 %v165
    %v638 = vunpack.c.l.b16 %v166
    %v639 = vunpack.c.h.b16 %v166
    %v640 = vunpack.c.l.b16 %v167
    %v641 = vunpack.c.h.b16 %v167
    %v642 = vunpack.c.l.b16 %v168
    %v643 = vunpack.c.h.b16 %v168
    %v644 = vunpack.c.l.b16 %v169
    %v645 = vunpack.c.h.b16 %v169
    %v646 = vunpack.c.l.b16 %v170
    %v647 = vunpack.c.h.b16 %v170
    %v648 = vunpack.c.l.b16 %v171
    %v649 = vunpack.c.h.b16 %v171
    %v650 = vunpack.c.l.b16 %v172
    %v651 = vunpack.c.h.b16 %v172
    %v652 = vunpack.c.l.b16 %v173
    %v653 = vunpack.c.h.b16 %v173
    %v654 = vunpack.c.l.b16 %v174
    %v655 = vunpack.c.h.b16 %v174
    %v656 = vunpack.c.l.b16 %v175
    %v657 = vunpack.c.h.b16 %v175
    %v658 = vunpack.c.l.b16 %v176
    %v659 = vunpack.c.h.b16 %v176
    %v660 = vunpack.c.l.b16 %v177
    %v661 = vunpack.c.h.b16 %v177
    %v662 = vunpack.c.l.b16 %v178
    %v663 = vunpack.c.h.b16 %v178
    %v664 = vunpack.c.l.b16 %v179
    %v665 = vunpack.c.h.b16 %v179
    %v666 = vunpack.c.l.b16 %v180
    %v667 = vunpack.c.h.b16 %v180
    %v668 = vunpack.c.l.b16 %v181
    %v669 = vunpack.c.h.b16 %v181
    %v670 = vunpack.c.l.b16 %v182
    %v671 = vunpack.c.h.b16 %v182
    %v672 = vunpack.c.l.b16 %v183
    %v673 = vunpack.c.h.b16 %v183
    %v674 = vunpack.c.l.b16 %v184
    %v675 = vunpack.c.h.b16 %v184
    %v676 = vunpack.c.l.b16 %v185
    %v677 = vunpack.c.h.b16 %v185
    %v678 = vunpack.c.l.b16 %v186
    %v679 = vunpack.c.h.b16 %v186
    %v680 = vunpack.c.l.b16 %v187
    %v681 = vunpack.c.h.b16 %v187
    %v682 = vunpack.c.l.b16 %v188
    %v683 = vunpack.c.h.b16 %v188
    %v684 = vunpack.c.l.b16 %v189
    %v685 = vunpack.c.h.b16 %v189
    %v686 = vunpack.c.l.b16 %v190
    %v687 = vunpack.c.h.b16 %v190
    %v688 = vunpack.c.l.b16 %v191
    %v689 = vunpack.c.h.b16 %v191
    %v690 = vunpack.c.l.b16 %v192
    %v691 = vunpack.c.h.b16 %v192
    %v692 = vunpack.c.l.b16 %v193
    %v693 = vunpack.c.h.b16 %v193
    %v694 = vunpack.c.l.b16 %v194
    %v695 = vunpack.c.h.b16 %v194
    %v696 = vunpack.c.l.b16 %v195
    %v697 = vunpack.c.h.b16 %v195
    %v698 = vunpack.c.l.b16 %v196
    %v699 = vunpack.c.h.b16 %v196
    %v700 = vunpack.c.l.b16 %v197
    %v701 = vunpack.c.h.b16 %v197
    %v702 = vunpack.c.l.b16 %v198
    %v703 = vunpack.c.h.b16 %v198
    %v704 = vunpack.c.l.b16 %v199
    %v705 = vunpack.c.h.b16 %v199
    %v706 = vunpack.c.l.b16 %v200
    %v707 = vunpack.c.h.b16 %v200
    %v708 = vunpack.c.l.b16 %v201
    %v709 = vunpack.c.h.b16 %v201
    %v710 = vunpack.c.l.b16 %v202
    %v711 = vunpack.c.h.b16 %v202
    %v712 = vunpack.c.l.b16 %v203
    %v713 = vunpack.c.h.b16 %v203
    %v714 = vunpack.c.l.b16 %v204
    %v715 = vunpack.c.h.b16 %v204
    %v716 = vunpack.c.l.b16 %v205
    %v717 = vunpack.c.h.b16 %v205
    %v718 = vunpack.c.l.b16 %v206
    %v719 = vunpack.c.h.b16 %v206
    %v720 = vunpack.c.l.b16 %v207
    %v721 = vunpack.c.h.b16 %v207
    %v722 = vunpack.c.l.b16 %v208
    %v723 = vunpack.c.h.b16 %v208
    %v724 = vunpack.c.l.b16 %v209
    %v725 = vunpack.c.h.b16 %v209
    %v726 = vunpack.c.l.b16 %v210
    %v727 = vunpack.c.h.b16 %v210
    %v728 = vunpack.c.l.b16 %v211
    %v729 = vunpack.c.h.b16 %v211
    %v730 = vunpack.c.l.b16 %v212
    %v731 = vunpack.c.h.b16 %v212
    %v732 = vunpack.c.l.b16 %v213
    %v733 = vunpack.c.h.b16 %v213
    %v734 = vunpack.c.l.b16 %v214
    %v735 = vunpack.c.h.b16 %v214
    %v736 = vunpack.c.l.b16 %v215
    %v737 = vunpack.c.h.b16 %v215
    %v738 = vunpack.c.l.b16 %v216
    %v739 = vunpack.c.h.b16 %v216
    %v740 = vunpack.c.l.b16 %v217
    %v741 = vunpack.c.h.b16 %v217
    %v742 = vunpack.c.l.b16 %v218
    %v743 = vunpack.c.h.b16 %v218
    %v744 = vunpack.c.l.b16 %v219
    %v745 = vunpack.c.h.b16 %v219
    %v746 = vunpack.c.l.b16 %v220
    %v747 = vunpack.c.h.b16 %v220
    %v748 = vunpack.c.l.b16 %v221
    %v749 = vunpack.c.h.b16 %v221
    %v750 = vunpack.c.l.b16 %v222
    %v751 = vunpack.c.h.b16 %v222
    %v752 = vunpack.c.l.b16 %v223
    %v753 = vunpack.c.h.b16 %v223
    %v754 = vunpack.c.l.b16 %v224
    %v755 = vunpack.c.h.b16 %v224
    %v756 = vunpack.c.l.b16 %v225
    %v757 = vunpack.c.h.b16 %v225
    %v758 = vunpack.c.l.b16 %v226
    %v759 = vunpack.c.h.b16 %v226
    %v760 = vunpack.c.l.b16 %v227
    %v761 = vunpack.c.h.b16 %v227
    %v762 = vunpack.c.l.b16 %v228
    %v763 = vunpack.c.h.b16 %v228
    %v764 = vunpack.c.l.b16 %v229
    %v765 = vunpack.c.h.b16 %v229
    %v766 = vunpack.c.l.b16 %v230
    %v767 = vunpack.c.h.b16 %v230
    %v768 = vunpack.c.l.b16 %v231
    %v769 = vunpack.c.h.b16 %v231
    %v770 = vunpack.c.l.b16 %v232
    %v771 = vunpack.c.h.b16 %v232
    %v772 = vunpack.c.l.b16 %v233
    %v773 = vunpack.c.h.b16 %v233
    %v774 = vunpack.c.l.b16 %v234
    %v775 = vunpack.c.h.b16 %v234
    %v776 = vunpack.c.l.b16 %v235
    %v777 = vunpack.c.h.b16 %v235
    %v778 = vunpack.c.l.b16 %v236
    %v779 = vunpack.c.h.b16 %v236
    %v780 = vunpack.c.l.b16 %v237
    %v781 = vunpack.c.h.b16 %v237
    %v782 = vunpack.c.l.b16 %v238
    %v783 = vunpack.c.h.b16 %v238
    %v784 = vunpack.c.l.b16 %v239
    %v785 = vunpack.c.h.b16 %v239
    %v786 = vunpack.c.l.b16 %v240
    %v787 = vunpack.c.h.b16 %v240
    %v788 = vunpack.c.l.b16 %v241
    %v789 = vunpack.c.h.b16 %v241
    %v790 = vunpack.c.l.b16 %v242
    %v791 = vunpack.c.h.b16 %v242
    %v792 = vunpack.c.l.b16 %v243
    %v793 = vunpack.c.h.b16 %v243
    %v794 = vunpack.c.l.b16 %v244
    %v795 = vunpack.c.h.b16 %v244
    %v796 = vunpack.c.l.b16 %v245
    %v797 = vunpack.c.h.b16 %v245
    %v798 = vunpack.c.l.b16 %v246
    %v799 = vunpack.c.h.b16 %v246
    %v800 = vunpack.c.l.b16 %v247
    %v801 = vunpack.c.h.b16 %v247
    %v802 = vunpack.c.l.b16 %v248
    %v803 = vunpack.c.h.b16 %v248
    %v804 = vunpack.c.l.b16 %v249
    %v805 = vunpack.c.h.b16 %v249
    %v806 = vunpack.c.l.b16 %v250
    %v807 = vunpack.c.h.b16 %v250
    %v808 = vunpack.c.l.b16 %v251
    %v809 = vunpack.c.h.b16 %v251
    %v810 = vunpack.c.l.b16 %v252
    %v811 = vunpack.c.h.b16 %v252
    %v812 = vunpack.c.l.b16 %v253
    %v813 = vunpack.c.h.b16 %v253
    %v814 = vunpack.c.l.b16 %v254
    %v815 = vunpack.c.h.b16 %v254
    %v816 = vunpack.c.l.b16 %v255
    %v817 = vunpack.c.h.b16 %v255
    %v818 = vunpack.c.l.b16 %v256
    %v819 = vunpack.c.h.b16 %v256
    %v820 = vunpack.c.l.b16 %v257
    %v821 = vunpack.c.h.b16 %v257
    %v822 = vunpack.c.l.b16 %v258
    %v823 = vunpack.c.h.b16 %v258
    %v824 = vunpack.c.l.b16 %v259
    %v825 = vunpack.c.h.b16 %v259
    %v826 = vunpack.c.l.b16 %v260
    %v827 = vunpack.c.h.b16 %v260
    %v828 = vunpack.c.l.b16 %v261
    %v829 = vunpack.c.h.b16 %v261
    %v830 = vunpack.c.l.b16 %v262
    %v831 = vunpack.c.h.b16 %v262
    %v832 = vunpack.c.l.b16 %v263
    %v833 = vunpack.c.h.b16 %v263
    %v834 = vunpack.c.l.b16 %v264
    %v835 = vunpack.c.h.b16 %v264
    %v836 = vunpack.c.l.b16 %v265
    %v837 = vunpack.c.h.b16 %v265
    %v838 = vunpack.c.l.b16 %v266
    %v839 = vunpack.c.h.b16 %v266
    %v840 = vunpack.c.l.b16 %v267
    %v841 = vunpack.c.h.b16 %v267
    %v842 = vunpack.c.l.b16 %v268
    %v843 = vunpack.c.h.b16 %v268
    %v844 = vunpack.c.l.b16 %v269
    %v845 = vunpack.c.h.b16 %v269
    %v846 = vunpack.c.l.b16 %v270
    %v847 = vunpack.c.h.b16 %v270
    %v848 = vunpack.c.l.b16 %v271
    %v849 = vunpack.c.h.b16 %v271
    %v850 = vunpack.c.l.b16 %v272
    %v851 = vunpack.c.h.b16 %v272
    %v852 = vunpack.c.l.b16 %v273
    %v853 = vunpack.c.h.b16 %v273
    %v854 = vunpack.c.l.b16 %v274
    %v855 = vunpack.c.h.b16 %v274
    %v856 = vunpack.c.l.b16 %v275
    %v857 = vunpack.c.h.b16 %v275
    %v858 = vunpack.c.l.b16 %v276
    %v859 = vunpack.c.h.b16 %v276
    %v860 = vunpack.c.l.b16 %v277
    %v861 = vunpack.c.h.b16 %v277
    %v862 = vunpack.c.l.b16 %v278
    %v863 = vunpack.c.h.b16 %v278
    %v864 = vunpack.c.l.b16 %v279
    %v865 = vunpack.c.h.b16 %v279
    %v866 = vunpack.c.l.b16 %v280
    %v867 = vunpack.c.h.b16 %v280
    %v868 = vunpack.c.l.b16 %v281
    %v869 = vunpack.c.h.b16 %v281
    %v870 = vunpack.c.l.b16 %v282
    %v871 = vunpack.c.h.b16 %v282
    %v872 = vunpack.c.l.b16 %v283
    %v873 = vunpack.c.h.b16 %v283
    %v874 = vunpack.c.l.b16 %v284
    %v875 = vunpack.c.h.b16 %v284
    %v876 = vunpack.c.l.b16 %v285
    %v877 = vunpack.c.h.b16 %v285
    %v878 = vunpack.c.l.b16 %v286
    %v879 = vunpack.c.h.b16 %v286
    %v880 = vunpack.c.l.b16 %v287
    %v881 = vunpack.c.h.b16 %v287
    %v882 = vunpack.c.l.b16 %v288
    %v883 = vunpack.c.h.b16 %v288
    %v884 = vunpack.c.l.b16 %v289
    %v885 = vunpack.c.h.b16 %v289
    %v886 = vunpack.c.l.b16 %v290
    %v887 = vunpack.c.h.b16 %v290
    %v888 = vunpack.c.l.b16 %v291
    %v889 = vunpack.c.h.b16 %v291
    %v890 = vpack.c.b16 %v502, %v498
    %v891 = vpack.c.b16 %v503, %v499
    %v892 = vpack.c.b16 %v504, %v500
    %v893 = vpack.c.b16 %v505, %v501
    %v894 = vpack.c.b16 %v510, %v506
    %v895 = vpack.c.b16 %v511, %v507
    %v896 = vpack.c.b16 %v512, %v508
    %v897 = vpack.c.b16 %v513, %v509
    %v898 = vpack.c.b16 %v518, %v514
    %v899 = vpack.c.b16 %v519, %v515
    %v900 = vpack.c.b16 %v520, %v516
    %v901 = vpack.c.b16 %v521, %v517
    %v902 = vpack.c.b16 %v526, %v522
    %v903 = vpack.c.b16 %v527, %v523
    %v904 = vpack.c.b16 %v528, %v524
    %v905 = vpack.c.b16 %v529, %v525
    %v906 = vpack.c.b16 %v534, %v530
    %v907 = vpack.c.b16 %v535, %v531
    %v908 = vpack.c.b16 %v536, %v532
    %v909 = vpack.c.b16 %v537, %v533
    %v910 = vpack.c.b16 %v542, %v538
    %v911 = vpack.c.b16 %v543, %v539
    %v912 = vpack.c.b16 %v544, %v540
    %v913 = vpack.c.b16 %v545, %v541
    %v914 = vpack.c.b16 %v550, %v546
    %v915 = vpack.c.b16 %v551, %v547
    %v916 = vpack.c.b16 %v552, %v548
    %v917 = vpack.c.b16 %v553, %v549
    %v918 = vpack.c.b16 %v558, %v554
    %v919 = vpack.c.b16 %v559, %v555
    %v920 = vpack.c.b16 %v560, %v556
    %v921 = vpack.c.b16 %v561, %v557
    %v922 = vpack.c.b16 %v566, %v562
    %v923 = vpack.c.b16 %v567, %v563
    %v924 = vpack.c.b16 %v568, %v564
    %v925 = vpack.c.b16 %v569, %v565
    %v926 = vpack.c.b16 %v574, %v570
    %v927 = vpack.c.b16 %v575, %v571
    %v928 = vpack.c.b16 %v576, %v572
    %v929 = vpack.c.b16 %v577, %v573
    %v930 = vpack.c.b16 %v582, %v578
    %v931 = vpack.c.b16 %v583, %v579
    %v932 = vpack.c.b16 %v584, %v580
    %v933 = vpack.c.b16 %v585, %v581
    %v934 = vpack.c.b16 %v590, %v586
    %v935 = vpack.c.b16 %v591, %v587
    %v936 = vpack.c.b16 %v592, %v588
    %v937 = vpack.c.b16 %v593, %v589
    %v938 = vpack.c.b16 %v598, %v594
    %v939 = vpack.c.b16 %v599, %v595
    %v940 = vpack.c.b16 %v600, %v596
    %v941 = vpack.c.b16 %v601, %v597
    %v942 = vpack.c.b16 %v606, %v602
    %v943 = vpack.c.b16 %v607, %v603
    %v944 = vpack.c.b16 %v608, %v604
    %v945 = vpack.c.b16 %v609, %v605
    %v946 = vpack.c.b16 %v614, %v610
    %v947 = vpack.c.b16 %v615, %v611
    %v948 = vpack.c.b16 %v616, %v612
    %v949 = vpack.c.b16 %v617, %v613
    %v950 = vpack.c.b16 %v622, %v618
    %v951 = vpack.c.b16 %v623, %v619
    %v952 = vpack.c.b16 %v624, %v620
    %v953 = vpack.c.b16 %v625, %v621
    %v954 = vpack.c.b16 %v630, %v626
    %v955 = vpack.c.b16 %v631, %v627
    %v956 = vpack.c.b16 %v632, %v628
    %v957 = vpack.c.b16 %v633, %v629
    %v958 = vpack.c.b16 %v638, %v634
    %v959 = vpack.c.b16 %v639, %v635
    %v960 = vpack.c.b16 %v640, %v636
    %v961 = vpack.c.b16 %v641, %v637
    %v962 = vpack.c.b16 %v646, %v642
    %v963 = vpack.c.b16 %v647, %v643
    %v964 = vpack.c.b16 %v648, %v644
    %v965 = vpack.c.b16 %v649, %v645
    %v966 = vpack.c.b16 %v654, %v650
    %v967 = vpack.c.b16 %v655, %v651
    %v968 = vpack.c.b16 %v656, %v652
    %v969 = vpack.c.b16 %v657, %v653
    %v970 = vpack.c.b16 %v662, %v658
    %v971 = vpack.c.b16 %v663, %v659
    %v972 = vpack.c.b16 %v664, %v660
    %v973 = vpack.c.b16 %v665, %v661
    %v974 = vpack.c.b16 %v670, %v666
    %v975 = vpack.c.b16 %v671, %v667
    %v976 = vpack.c.b16 %v672, %v668
    %v977 = vpack.c.b16 %v673, %v669
    %v978 = vpack.c.b16 %v678, %v674
    %v979 = vpack.c.b16 %v679, %v675
    %v980 = vpack.c.b16 %v680, %v676
    %v981 = vpack.c.b16 %v681, %v677
    %v982 = vpack.c.b16 %v686, %v682
    %v983 = vpack.c.b16 %v687, %v683
    %v984 = vpack.c.b16 %v688, %v684
    %v985 = vpack.c.b16 %v689, %v685
    %v986 = vpack.c.b16 %v694, %v690
    %v987 = vpack.c.b16 %v695, %v691
    %v988 = vpack.c.b16 %v696, %v692
    %v989 = vpack.c.b16 %v697, %v693
    %v990 = vpack.c.b16 %v702, %v698
    %v991 = vpack.c.b16 %v703, %v699
    %v992 = vpack.c.b16 %v704, %v700
    %v993 = vpack.c.b16 %v705, %v701
    %v994 = vpack.c.b16 %v710, %v706
    %v995 = vpack.c.b16 %v711, %v707
    %v996 = vpack.c.b16 %v712, %v708
    %v997 = vpack.c.b16 %v713, %v709
    %v998 = vpack.c.b16 %v718, %v714
    %v999 = vpack.c.b16 %v719, %v715
    %v1000 = vpack.c.b16 %v720, %v716
    %v1001 = vpack.c.b16 %v721, %v717
    %v1002 = vpack.c.b16 %v726, %v722
    %v1003 = vpack.c.b16 %v727, %v723
    %v1004 = vpack.c.b16 %v728, %v724
    %v1005 = vpack.c.b16 %v729, %v725
    %v1006 = vpack.c.b16 %v734, %v730
    %v1007 = vpack.c.b16 %v735, %v731
    %v1008 = vpack.c.b16 %v736, %v732
    %v1009 = vpack.c.b16 %v737, %v733
    %v1010 = vpack.c.b16 %v742, %v738
    %v1011 = vpack.c.b16 %v743, %v739
    %v1012 = vpack.c.b16 %v744, %v740
    %v1013 = vpack.c.b16 %v745, %v741
    %v1014 = vpack.c.b16 %v750, %v746
    %v1015 = vpack.c.b16 %v751, %v747
    %v1016 = vpack.c.b16 %v752, %v748
    %v1017 = vpack.c.b16 %v753, %v749
    %v1018 = vpack.c.b16 %v758, %v754
    %v1019 = vpack.c.b16 %v759, %v755
    %v1020 = vpack.c.b16 %v760, %v756
    %v1021 = vpack.c.b16 %v761, %v757
    %v1022 = vpack.c.b16 %v766, %v762
    %v1023 = vpack.c.b16 %v767, %v763
    %v1024 = vpack.c.b16 %v768, %v764
    %v1025 = vpack.c.b16 %v769, %v765
    %v1026 = vpack.c.b16 %v774, %v770
    %v1027 = vpack.c.b16 %v775, %v771
    %v1028 = vpack.c.b16 %v776, %v772
    %v1029 = vpack.c.b16 %v777, %v773
    %v1030 = vpack.c.b16 %v782, %v778
    %v1031 = vpack.c.b16 %v783, %v779
    %v1032 = vpack.c.b16 %v784, %v780
    %v1033 = vpack.c.b16 %v785, %v781
    %v1034 = vpack.c.b16 %v790, %v786
    %v1035 = vpack.c.b16 %v791, %v787
    %v1036 = vpack.c.b16 %v792, %v788
    %v1037 = vpack.c.b16 %v793, %v789
    %v1038 = vpack.c.b16 %v798, %v794
    %v1039 = vpack.c.b16 %v799, %v795
    %v1040 = vpack.c.b16 %v800, %v796
    %v1041 = vpack.c.b16 %v801, %v797
    %v1042 = vpack.c.b16 %v806, %v802
    %v1043 = vpack.c.b16 %v807, %v803
    %v1044 = vpack.c.b16 %v808, %v804
    %v1045 = vpack.c.b16 %v809, %v805
    %v1046 = vpack.c.b16 %v814, %v810
    %v1047 = vpack.c.b16 %v815, %v811
    %v1048 = vpack.c.b16 %v816, %v812
    %v1049 = vpack.c.b16 %v817, %v813
    %v1050 = vpack.c.b16 %v822, %v818
    %v1051 = vpack.c.b16 %v823, %v819
    %v1052 = vpack.c.b16 %v824, %v820
    %v1053 = vpack.c.b16 %v825, %v821
    %v1054 = vpack.c.b16 %v830, %v826
    %v1055 = vpack.c.b16 %v831, %v827
    %v1056 = vpack.c.b16 %v832, %v828
    %v1057 = vpack.c.b16 %v833, %v829
    %v1058 = vpack.c.b16 %v838, %v834
    %v1059 = vpack.c.b16 %v839, %v835
    %v1060 = vpack.c.b16 %v840, %v836
    %v1061 = vpack.c.b16 %v841, %v837
    %v1062 = vpack.c.b16 %v846, %v842
    %v1063 = vpack.c.b16 %v847, %v843
    %v1064 = vpack.c.b16 %v848, %v844
    %v1065 = vpack.c.b16 %v849, %v845
    %v1066 = vpack.c.b16 %v854, %v850
    %v1067 = vpack.c.b16 %v855, %v851
    %v1068 = vpack.c.b16 %v856, %v852
    %v1069 = vpack.c.b16 %v857, %v853
    %v1070 = vpack.c.b16 %v862, %v858
    %v1071 = vpack.c.b16 %v863, %v859
    %v1072 = vpack.c.b16 %v864, %v860
    %v1073 = vpack.c.b16 %v865, %v861
    %v1074 = vpack.c.b16 %v870, %v866
    %v1075 = vpack.c.b16 %v871, %v867
    %v1076 = vpack.c.b16 %v872, %v868
    %v1077 = vpack.c.b16 %v873, %v869
    %v1078 = vpack.c.b16 %v878, %v874
    %v1079 = vpack.c.b16 %v879, %v875
    %v1080 = vpack.c.b16 %v880, %v876
    %v1081 = vpack.c.b16 %v881, %v877
    %v1082 = vpack.c.b16 %v886, %v882
    %v1083 = vpack.c.b16 %v887, %v883
    %v1084 = vpack.c.b16 %v888, %v884
    %v1085 = vpack.c.b16 %v889, %v885
    %vm1282 = vcmask 130048
    %v1284 = vsel %vm1282, %v95, 0
    %1286 = vmatpush.bf16.msra.mxu0 %v918
    %1287 = vmatpush.bf16.msra.mxu0 %v914
    %1288 = vmatpush.bf16.msra.mxu0 %v910
    %1289 = vmatpush.bf16.msra.mxu0 %v906
    %1290 = vmatpush.bf16.msra.mxu0 %v902
    %1291 = vmatpush.bf16.msra.mxu0 %v898
    %1292 = vmatpush.bf16.msra.mxu0 %v894
    %1293 = vmatpush.bf16.msra.mxu0 %v890
    %1294 = vmatmul.bf16.gmra.mxu0 %v89
    %v1295 = vpop.f32.mrf.mxu0
    %v1296 = vadd.f32 %v294, %v1295
    %v1297 = vpop.f32.mrf.mxu0
    %1298 = vdwg.mxu0
    %1299 = vmatpush.bf16.msra.mxu0 %v950
    %1300 = vmatpush.bf16.msra.mxu0 %v946
    %1301 = vmatpush.bf16.msra.mxu0 %v942
    %1302 = vmatpush.bf16.msra.mxu0 %v938
    %1303 = vmatpush.bf16.msra.mxu0 %v934
    %1304 = vmatpush.bf16.msra.mxu0 %v930
    %1305 = vmatpush.bf16.msra.mxu0 %v926
    %1306 = vmatpush.bf16.msra.mxu0 %v922
    %1307 = vmatmul.bf16.gmra.mxu0 %v90
    %v1308 = vpop.f32.mrf.mxu0
    %v1309 = vadd.f32 %v1296, %v1308
    %v1310 = vpop.f32.mrf.mxu0
    %1311 = vdwg.mxu0
    %1312 = vmatpush.bf16.msra.mxu0 %v982
    %1313 = vmatpush.bf16.msra.mxu0 %v978
    %1314 = vmatpush.bf16.msra.mxu0 %v974
    %1315 = vmatpush.bf16.msra.mxu0 %v970
    %1316 = vmatpush.bf16.msra.mxu0 %v966
    %1317 = vmatpush.bf16.msra.mxu0 %v962
    %1318 = vmatpush.bf16.msra.mxu0 %v958
    %1319 = vmatpush.bf16.msra.mxu0 %v954
    %1320 = vmatmul.bf16.gmra.mxu0 %v91
    %v1321 = vpop.f32.mrf.mxu0
    %v1322 = vadd.f32 %v1309, %v1321
    %v1323 = vpop.f32.mrf.mxu0
    %1324 = vdwg.mxu0
    %1325 = vmatpush.bf16.msra.mxu0 %v1014
    %1326 = vmatpush.bf16.msra.mxu0 %v1010
    %1327 = vmatpush.bf16.msra.mxu0 %v1006
    %1328 = vmatpush.bf16.msra.mxu0 %v1002
    %1329 = vmatpush.bf16.msra.mxu0 %v998
    %1330 = vmatpush.bf16.msra.mxu0 %v994
    %1331 = vmatpush.bf16.msra.mxu0 %v990
    %1332 = vmatpush.bf16.msra.mxu0 %v986
    %1333 = vmatmul.bf16.gmra.mxu0 %v92
    %v1334 = vpop.f32.mrf.mxu0
    %v1335 = vadd.f32 %v1322, %v1334
    %v1336 = vpop.f32.mrf.mxu0
    %1337 = vdwg.mxu0
    %1338 = vmatpush.bf16.msra.mxu0 %v1046
    %1339 = vmatpush.bf16.msra.mxu0 %v1042
    %1340 = vmatpush.bf16.msra.mxu0 %v1038
    %1341 = vmatpush.bf16.msra.mxu0 %v1034
    %1342 = vmatpush.bf16.msra.mxu0 %v1030
    %1343 = vmatpush.bf16.msra.mxu0 %v1026
    %1344 = vmatpush.bf16.msra.mxu0 %v1022
    %1345 = vmatpush.bf16.msra.mxu0 %v1018
    %1346 = vmatmul.bf16.gmra.mxu0 %v93
    %v1347 = vpop.f32.mrf.mxu0
    %v1348 = vadd.f32 %v1335, %v1347
    %v1349 = vpop.f32.mrf.mxu0
    %1350 = vdwg.mxu0
    %1351 = vmatpush.bf16.msra.mxu0 %v1078
    %1352 = vmatpush.bf16.msra.mxu0 %v1074
    %1353 = vmatpush.bf16.msra.mxu0 %v1070
    %1354 = vmatpush.bf16.msra.mxu0 %v1066
    %1355 = vmatpush.bf16.msra.mxu0 %v1062
    %1356 = vmatpush.bf16.msra.mxu0 %v1058
    %1357 = vmatpush.bf16.msra.mxu0 %v1054
    %1358 = vmatpush.bf16.msra.mxu0 %v1050
    %1359 = vmatmul.bf16.gmra.mxu0 %v94
    %v1360 = vpop.f32.mrf.mxu0
    %v1361 = vadd.f32 %v1348, %v1360
    %v1362 = vpop.f32.mrf.mxu0
    %1363 = vdwg.mxu0
    %1364 = vmatpush.bf16.msra.mxu0 0
    %1365 = vmatpush.bf16.msra.mxu0 0
    %1366 = vmatpush.bf16.msra.mxu0 0
    %1367 = vmatpush.bf16.msra.mxu0 0
    %1368 = vmatpush.bf16.msra.mxu0 0
    %1369 = vmatpush.bf16.msra.mxu0 0
    %1370 = vmatpush.bf16.msra.mxu0 0
    %1371 = vmatpush.bf16.msra.mxu0 %v1082
    %1372 = vmatmul.bf16.gmra.mxu0 %v1284
    %v1373 = vpop.f32.mrf.mxu0
    %v1374 = vadd.f32 %v1361, %v1373
    %v1375 = vpop.f32.mrf.mxu0
    %1376 = vdwg.mxu0
    %1377 = vmatpush.bf16.msra.mxu0 %v919
    %1378 = vmatpush.bf16.msra.mxu0 %v915
    %1379 = vmatpush.bf16.msra.mxu0 %v911
    %1380 = vmatpush.bf16.msra.mxu0 %v907
    %1381 = vmatpush.bf16.msra.mxu0 %v903
    %1382 = vmatpush.bf16.msra.mxu0 %v899
    %1383 = vmatpush.bf16.msra.mxu0 %v895
    %1384 = vmatpush.bf16.msra.mxu0 %v891
    %1385 = vmatmul.bf16.gmra.mxu0 %v89
    %v1386 = vpop.f32.mrf.mxu0
    %v1387 = vadd.f32 %v295, %v1386
    %v1388 = vpop.f32.mrf.mxu0
    %1389 = vdwg.mxu0
    %1390 = vmatpush.bf16.msra.mxu0 %v951
    %1391 = vmatpush.bf16.msra.mxu0 %v947
    %1392 = vmatpush.bf16.msra.mxu0 %v943
    %1393 = vmatpush.bf16.msra.mxu0 %v939
    %1394 = vmatpush.bf16.msra.mxu0 %v935
    %1395 = vmatpush.bf16.msra.mxu0 %v931
    %1396 = vmatpush.bf16.msra.mxu0 %v927
    %1397 = vmatpush.bf16.msra.mxu0 %v923
    %1398 = vmatmul.bf16.gmra.mxu0 %v90
    %v1399 = vpop.f32.mrf.mxu0
    %v1400 = vadd.f32 %v1387, %v1399
    %v1401 = vpop.f32.mrf.mxu0
    %1402 = vdwg.mxu0
    %1403 = vmatpush.bf16.msra.mxu0 %v983
    %1404 = vmatpush.bf16.msra.mxu0 %v979
    %1405 = vmatpush.bf16.msra.mxu0 %v975
    %1406 = vmatpush.bf16.msra.mxu0 %v971
    %1407 = vmatpush.bf16.msra.mxu0 %v967
    %1408 = vmatpush.bf16.msra.mxu0 %v963
    %1409 = vmatpush.bf16.msra.mxu0 %v959
    %1410 = vmatpush.bf16.msra.mxu0 %v955
    %1411 = vmatmul.bf16.gmra.mxu0 %v91
    %v1412 = vpop.f32.mrf.mxu0
    %v1413 = vadd.f32 %v1400, %v1412
    %v1414 = vpop.f32.mrf.mxu0
    %1415 = vdwg.mxu0
    %1416 = vmatpush.bf16.msra.mxu0 %v1015
    %1417 = vmatpush.bf16.msra.mxu0 %v1011
    %1418 = vmatpush.bf16.msra.mxu0 %v1007
    %1419 = vmatpush.bf16.msra.mxu0 %v1003
    %1420 = vmatpush.bf16.msra.mxu0 %v999
    %1421 = vmatpush.bf16.msra.mxu0 %v995
    %1422 = vmatpush.bf16.msra.mxu0 %v991
    %1423 = vmatpush.bf16.msra.mxu0 %v987
    %1424 = vmatmul.bf16.gmra.mxu0 %v92
    %v1425 = vpop.f32.mrf.mxu0
    %v1426 = vadd.f32 %v1413, %v1425
    %v1427 = vpop.f32.mrf.mxu0
    %1428 = vdwg.mxu0
    %1429 = vmatpush.bf16.msra.mxu0 %v1047
    %1430 = vmatpush.bf16.msra.mxu0 %v1043
    %1431 = vmatpush.bf16.msra.mxu0 %v1039
    %1432 = vmatpush.bf16.msra.mxu0 %v1035
    %1433 = vmatpush.bf16.msra.mxu0 %v1031
    %1434 = vmatpush.bf16.msra.mxu0 %v1027
    %1435 = vmatpush.bf16.msra.mxu0 %v1023
    %1436 = vmatpush.bf16.msra.mxu0 %v1019
    %1437 = vmatmul.bf16.gmra.mxu0 %v93
    %v1438 = vpop.f32.mrf.mxu0
    %v1439 = vadd.f32 %v1426, %v1438
    %v1440 = vpop.f32.mrf.mxu0
    %1441 = vdwg.mxu0
    %1442 = vmatpush.bf16.msra.mxu0 %v1079
    %1443 = vmatpush.bf16.msra.mxu0 %v1075
    %1444 = vmatpush.bf16.msra.mxu0 %v1071
    %1445 = vmatpush.bf16.msra.mxu0 %v1067
    %1446 = vmatpush.bf16.msra.mxu0 %v1063
    %1447 = vmatpush.bf16.msra.mxu0 %v1059
    %1448 = vmatpush.bf16.msra.mxu0 %v1055
    %1449 = vmatpush.bf16.msra.mxu0 %v1051
    %1450 = vmatmul.bf16.gmra.mxu0 %v94
    %v1451 = vpop.f32.mrf.mxu0
    %v1452 = vadd.f32 %v1439, %v1451
    %v1453 = vpop.f32.mrf.mxu0
    %1454 = vdwg.mxu0
    %1455 = vmatpush.bf16.msra.mxu0 0
    %1456 = vmatpush.bf16.msra.mxu0 0
    %1457 = vmatpush.bf16.msra.mxu0 0
    %1458 = vmatpush.bf16.msra.mxu0 0
    %1459 = vmatpush.bf16.msra.mxu0 0
    %1460 = vmatpush.bf16.msra.mxu0 0
    %1461 = vmatpush.bf16.msra.mxu0 0
    %1462 = vmatpush.bf16.msra.mxu0 %v1083
    %1463 = vmatmul.bf16.gmra.mxu0 %v1284
    %v1464 = vpop.f32.mrf.mxu0
    %v1465 = vadd.f32 %v1452, %v1464
    %v1466 = vpop.f32.mrf.mxu0
    %1467 = vdwg.mxu0
    %1468 = vmatpush.bf16.msra.mxu0 %v920
    %1469 = vmatpush.bf16.msra.mxu0 %v916
    %1470 = vmatpush.bf16.msra.mxu0 %v912
    %1471 = vmatpush.bf16.msra.mxu0 %v908
    %1472 = vmatpush.bf16.msra.mxu0 %v904
    %1473 = vmatpush.bf16.msra.mxu0 %v900
    %1474 = vmatpush.bf16.msra.mxu0 %v896
    %1475 = vmatpush.bf16.msra.mxu0 %v892
    %1476 = vmatmul.bf16.gmra.mxu0 %v89
    %v1477 = vpop.f32.mrf.mxu0
    %v1478 = vadd.f32 %v296, %v1477
    %v1479 = vpop.f32.mrf.mxu0
    %1480 = vdwg.mxu0
    %1481 = vmatpush.bf16.msra.mxu0 %v952
    %1482 = vmatpush.bf16.msra.mxu0 %v948
    %1483 = vmatpush.bf16.msra.mxu0 %v944
    %1484 = vmatpush.bf16.msra.mxu0 %v940
    %1485 = vmatpush.bf16.msra.mxu0 %v936
    %1486 = vmatpush.bf16.msra.mxu0 %v932
    %1487 = vmatpush.bf16.msra.mxu0 %v928
    %1488 = vmatpush.bf16.msra.mxu0 %v924
    %1489 = vmatmul.bf16.gmra.mxu0 %v90
    %v1490 = vpop.f32.mrf.mxu0
    %v1491 = vadd.f32 %v1478, %v1490
    %v1492 = vpop.f32.mrf.mxu0
    %1493 = vdwg.mxu0
    %1494 = vmatpush.bf16.msra.mxu0 %v984
    %1495 = vmatpush.bf16.msra.mxu0 %v980
    %1496 = vmatpush.bf16.msra.mxu0 %v976
    %1497 = vmatpush.bf16.msra.mxu0 %v972
    %1498 = vmatpush.bf16.msra.mxu0 %v968
    %1499 = vmatpush.bf16.msra.mxu0 %v964
    %1500 = vmatpush.bf16.msra.mxu0 %v960
    %1501 = vmatpush.bf16.msra.mxu0 %v956
    %1502 = vmatmul.bf16.gmra.mxu0 %v91
    %v1503 = vpop.f32.mrf.mxu0
    %v1504 = vadd.f32 %v1491, %v1503
    %v1505 = vpop.f32.mrf.mxu0
    %1506 = vdwg.mxu0
    %1507 = vmatpush.bf16.msra.mxu0 %v1016
    %1508 = vmatpush.bf16.msra.mxu0 %v1012
    %1509 = vmatpush.bf16.msra.mxu0 %v1008
    %1510 = vmatpush.bf16.msra.mxu0 %v1004
    %1511 = vmatpush.bf16.msra.mxu0 %v1000
    %1512 = vmatpush.bf16.msra.mxu0 %v996
    %1513 = vmatpush.bf16.msra.mxu0 %v992
    %1514 = vmatpush.bf16.msra.mxu0 %v988
    %1515 = vmatmul.bf16.gmra.mxu0 %v92
    %v1516 = vpop.f32.mrf.mxu0
    %v1517 = vadd.f32 %v1504, %v1516
    %v1518 = vpop.f32.mrf.mxu0
    %1519 = vdwg.mxu0
    %1520 = vmatpush.bf16.msra.mxu0 %v1048
    %1521 = vmatpush.bf16.msra.mxu0 %v1044
    %1522 = vmatpush.bf16.msra.mxu0 %v1040
    %1523 = vmatpush.bf16.msra.mxu0 %v1036
    %1524 = vmatpush.bf16.msra.mxu0 %v1032
    %1525 = vmatpush.bf16.msra.mxu0 %v1028
    %1526 = vmatpush.bf16.msra.mxu0 %v1024
    %1527 = vmatpush.bf16.msra.mxu0 %v1020
    %1528 = vmatmul.bf16.gmra.mxu0 %v93
    %v1529 = vpop.f32.mrf.mxu0
    %v1530 = vadd.f32 %v1517, %v1529
    %v1531 = vpop.f32.mrf.mxu0
    %1532 = vdwg.mxu0
    %1533 = vmatpush.bf16.msra.mxu0 %v1080
    %1534 = vmatpush.bf16.msra.mxu0 %v1076
    %1535 = vmatpush.bf16.msra.mxu0 %v1072
    %1536 = vmatpush.bf16.msra.mxu0 %v1068
    %1537 = vmatpush.bf16.msra.mxu0 %v1064
    %1538 = vmatpush.bf16.msra.mxu0 %v1060
    %1539 = vmatpush.bf16.msra.mxu0 %v1056
    %1540 = vmatpush.bf16.msra.mxu0 %v1052
    %1541 = vmatmul.bf16.gmra.mxu0 %v94
    %v1542 = vpop.f32.mrf.mxu0
    %v1543 = vadd.f32 %v1530, %v1542
    %v1544 = vpop.f32.mrf.mxu0
    %1545 = vdwg.mxu0
    %1546 = vmatpush.bf16.msra.mxu0 0
    %1547 = vmatpush.bf16.msra.mxu0 0
    %1548 = vmatpush.bf16.msra.mxu0 0
    %1549 = vmatpush.bf16.msra.mxu0 0
    %1550 = vmatpush.bf16.msra.mxu0 0
    %1551 = vmatpush.bf16.msra.mxu0 0
    %1552 = vmatpush.bf16.msra.mxu0 0
    %1553 = vmatpush.bf16.msra.mxu0 %v1084
    %1554 = vmatmul.bf16.gmra.mxu0 %v1284
    %v1555 = vpop.f32.mrf.mxu0
    %v1556 = vadd.f32 %v1543, %v1555
    %v1557 = vpop.f32.mrf.mxu0
    %1558 = vdwg.mxu0
    %1559 = vmatpush.bf16.msra.mxu0 %v921
    %1560 = vmatpush.bf16.msra.mxu0 %v917
    %1561 = vmatpush.bf16.msra.mxu0 %v913
    %1562 = vmatpush.bf16.msra.mxu0 %v909
    %1563 = vmatpush.bf16.msra.mxu0 %v905
    %1564 = vmatpush.bf16.msra.mxu0 %v901
    %1565 = vmatpush.bf16.msra.mxu0 %v897
    %1566 = vmatpush.bf16.msra.mxu0 %v893
    %1567 = vmatmul.bf16.gmra.mxu0 %v89
    %v1568 = vpop.f32.mrf.mxu0
    %v1569 = vadd.f32 %v297, %v1568
    %v1570 = vpop.f32.mrf.mxu0
    %1571 = vdwg.mxu0
    %1572 = vmatpush.bf16.msra.mxu0 %v953
    %1573 = vmatpush.bf16.msra.mxu0 %v949
    %1574 = vmatpush.bf16.msra.mxu0 %v945
    %1575 = vmatpush.bf16.msra.mxu0 %v941
    %1576 = vmatpush.bf16.msra.mxu0 %v937
    %1577 = vmatpush.bf16.msra.mxu0 %v933
    %1578 = vmatpush.bf16.msra.mxu0 %v929
    %1579 = vmatpush.bf16.msra.mxu0 %v925
    %1580 = vmatmul.bf16.gmra.mxu0 %v90
    %v1581 = vpop.f32.mrf.mxu0
    %v1582 = vadd.f32 %v1569, %v1581
    %v1583 = vpop.f32.mrf.mxu0
    %1584 = vdwg.mxu0
    %1585 = vmatpush.bf16.msra.mxu0 %v985
    %1586 = vmatpush.bf16.msra.mxu0 %v981
    %1587 = vmatpush.bf16.msra.mxu0 %v977
    %1588 = vmatpush.bf16.msra.mxu0 %v973
    %1589 = vmatpush.bf16.msra.mxu0 %v969
    %1590 = vmatpush.bf16.msra.mxu0 %v965
    %1591 = vmatpush.bf16.msra.mxu0 %v961
    %1592 = vmatpush.bf16.msra.mxu0 %v957
    %1593 = vmatmul.bf16.gmra.mxu0 %v91
    %v1594 = vpop.f32.mrf.mxu0
    %v1595 = vadd.f32 %v1582, %v1594
    %v1596 = vpop.f32.mrf.mxu0
    %1597 = vdwg.mxu0
    %1598 = vmatpush.bf16.msra.mxu0 %v1017
    %1599 = vmatpush.bf16.msra.mxu0 %v1013
    %1600 = vmatpush.bf16.msra.mxu0 %v1009
    %1601 = vmatpush.bf16.msra.mxu0 %v1005
    %1602 = vmatpush.bf16.msra.mxu0 %v1001
    %1603 = vmatpush.bf16.msra.mxu0 %v997
    %1604 = vmatpush.bf16.msra.mxu0 %v993
    %1605 = vmatpush.bf16.msra.mxu0 %v989
    %1606 = vmatmul.bf16.gmra.mxu0 %v92
    %v1607 = vpop.f32.mrf.mxu0
    %v1608 = vadd.f32 %v1595, %v1607
    %v1609 = vpop.f32.mrf.mxu0
    %1610 = vdwg.mxu0
    %1611 = vmatpush.bf16.msra.mxu0 %v1049
    %1612 = vmatpush.bf16.msra.mxu0 %v1045
    %1613 = vmatpush.bf16.msra.mxu0 %v1041
    %1614 = vmatpush.bf16.msra.mxu0 %v1037
    %1615 = vmatpush.bf16.msra.mxu0 %v1033
    %1616 = vmatpush.bf16.msra.mxu0 %v1029
    %1617 = vmatpush.bf16.msra.mxu0 %v1025
    %1618 = vmatpush.bf16.msra.mxu0 %v1021
    %1619 = vmatmul.bf16.gmra.mxu0 %v93
    %v1620 = vpop.f32.mrf.mxu0
    %v1621 = vadd.f32 %v1608, %v1620
    %v1622 = vpop.f32.mrf.mxu0
    %1623 = vdwg.mxu0
    %1624 = vmatpush.bf16.msra.mxu0 %v1081
    %1625 = vmatpush.bf16.msra.mxu0 %v1077
    %1626 = vmatpush.bf16.msra.mxu0 %v1073
    %1627 = vmatpush.bf16.msra.mxu0 %v1069
    %1628 = vmatpush.bf16.msra.mxu0 %v1065
    %1629 = vmatpush.bf16.msra.mxu0 %v1061
    %1630 = vmatpush.bf16.msra.mxu0 %v1057
    %1631 = vmatpush.bf16.msra.mxu0 %v1053
    %1632 = vmatmul.bf16.gmra.mxu0 %v94
    %v1633 = vpop.f32.mrf.mxu0
    %v1634 = vadd.f32 %v1621, %v1633
    %v1635 = vpop.f32.mrf.mxu0
    %1636 = vdwg.mxu0
    %1637 = vmatpush.bf16.msra.mxu0 0
    %1638 = vmatpush.bf16.msra.mxu0 0
    %1639 = vmatpush.bf16.msra.mxu0 0
    %1640 = vmatpush.bf16.msra.mxu0 0
    %1641 = vmatpush.bf16.msra.mxu0 0
    %1642 = vmatpush.bf16.msra.mxu0 0
    %1643 = vmatpush.bf16.msra.mxu0 0
    %1644 = vmatpush.bf16.msra.mxu0 %v1085
    %1645 = vmatmul.bf16.gmra.mxu0 %v1284
    %v1646 = vpop.f32.mrf.mxu0
    %v1647 = vadd.f32 %v1634, %v1646
    %v1648 = vpop.f32.mrf.mxu0
    %1649 = vdwg.mxu0
    %v1650 = vmax.f32 %v1374, 0.0
    %v1651 = vmax.f32 %v1465, 0.0
    %v1652 = vmax.f32 %v1556, 0.0
    %v1653 = vmax.f32 %v1647, 0.0
    %v1654 = vpack.c.bf16 %v1650, %v1650
    %v1655 = vpack.c.bf16 %v1651, %v1651
    %v1656 = vpack.c.bf16 %v1652, %v1652
    %v1657 = vpack.c.bf16 %v1653, %v1653
    %v1658 = vld [vmem:[#allocation5] sm:$0xff]
    %v1659 = vld [vmem:[#allocation5 + $0x8] sm:$0xff]
    %v1660 = vld [vmem:[#allocation5 + $0x10] sm:$0xff]
    %v1661 = vld [vmem:[#allocation5 + $0x18] sm:$0xff]
    %v1662 = vld [vmem:[#allocation5 + $0x20] sm:$0xff]
    %v1663 = vld [vmem:[#allocation5 + $0x28] sm:$0xff]
    %v1664 = vld [vmem:[#allocation5 + $0x30] sm:$0xff]
    %v1665 = vld [vmem:[#allocation5 + $0x38] sm:$0xff]
    %v1666 = vld [vmem:[#allocation5 + $0x40] sm:$0xff]
    %v1667 = vld [vmem:[#allocation5 + $0x48] sm:$0xff]
    %v1668 = vld [vmem:[#allocation5 + $0x50] sm:$0xff]
    %v1669 = vld [vmem:[#allocation5 + $0x58] sm:$0xff]
    %v1670 = vld [vmem:[#allocation5 + $0x60] sm:$0xff]
    %v1671 = vld [vmem:[#allocation5 + $0x68] sm:$0xff]
    %v1672 = vld [vmem:[#allocation5 + $0x70] sm:$0xff]
    %v1673 = vld [vmem:[#allocation5 + $0x78] sm:$0xff]
    %v1674 = vld [vmem:[#allocation5 + $0x80] sm:$0xff]
    %v1675 = vld [vmem:[#allocation5 + $0x88] sm:$0xff]
    %v1676 = vld [vmem:[#allocation5 + $0x90] sm:$0xff]
    %v1677 = vld [vmem:[#allocation5 + $0x98] sm:$0xff]
    %v1678 = vld [vmem:[#allocation5 + $0xa0] sm:$0xff]
    %v1679 = vld [vmem:[#allocation5 + $0xa8] sm:$0xff]
    %v1680 = vld [vmem:[#allocation5 + $0xb0] sm:$0xff]
    %v1681 = vld [vmem:[#allocation5 + $0xb8] sm:$0xff]
    %v1682 = vld [vmem:[#allocation5 + $0xc0] sm:$0xff]
    %v1683 = vld [vmem:[#allocation5 + $0xc8] sm:$0xff]
    %v1684 = vld [vmem:[#allocation5 + $0xd0] sm:$0xff]
    %v1685 = vld [vmem:[#allocation5 + $0xd8] sm:$0xff]
    %v1686 = vld [vmem:[#allocation5 + $0xe0] sm:$0xff]
    %v1687 = vld [vmem:[#allocation5 + $0xe8] sm:$0xff]
    %v1688 = vld [vmem:[#allocation5 + $0xf0] sm:$0xff]
    %v1689 = vld [vmem:[#allocation5 + $0xf8] sm:$0xff]
    %v1690 = vld [vmem:[#allocation5 + $0x100] sm:$0xff]
    %v1691 = vld [vmem:[#allocation5 + $0x108] sm:$0xff]
    %v1692 = vld [vmem:[#allocation5 + $0x110] sm:$0xff]
    %v1693 = vld [vmem:[#allocation5 + $0x118] sm:$0xff]
    %v1694 = vld [vmem:[#allocation5 + $0x120] sm:$0xff]
    %v1695 = vld [vmem:[#allocation5 + $0x128] sm:$0xff]
    %v1696 = vld [vmem:[#allocation5 + $0x130] sm:$0xff]
    %v1697 = vld [vmem:[#allocation5 + $0x138] sm:$0xff]
    %v1698 = vld [vmem:[#allocation5 + $0x140] sm:$0xff]
    %v1699 = vld [vmem:[#allocation5 + $0x148] sm:$0xff]
    %v1700 = vld [vmem:[#allocation5 + $0x150] sm:$0xff]
    %v1701 = vld [vmem:[#allocation5 + $0x158] sm:$0xff]
    %v1702 = vld [vmem:[#allocation5 + $0x160] sm:$0xff]
    %v1703 = vld [vmem:[#allocation5 + $0x168] sm:$0xff]
    %v1704 = vld [vmem:[#allocation5 + $0x170] sm:$0xff]
    %v1705 = vld [vmem:[#allocation5 + $0x178] sm:$0xff]
    %v1706 = vld [vmem:[#allocation5 + $0x180] sm:$0xff]
    %v1707 = vld [vmem:[#allocation5 + $0x188] sm:$0xff]
    %v1708 = vld [vmem:[#allocation5 + $0x190] sm:$0xff]
    %v1709 = vld [vmem:[#allocation5 + $0x198] sm:$0xff]
    %v1710 = vld [vmem:[#allocation5 + $0x1a0] sm:$0xff]
    %v1711 = vld [vmem:[#allocation5 + $0x1a8] sm:$0xff]
    %v1712 = vld [vmem:[#allocation5 + $0x1b0] sm:$0xff]
    %v1713 = vld [vmem:[#allocation5 + $0x1b8] sm:$0xff]
    %v1714 = vld [vmem:[#allocation5 + $0x1c0] sm:$0xff]
    %v1715 = vld [vmem:[#allocation5 + $0x1c8] sm:$0xff]
    %v1716 = vld [vmem:[#allocation5 + $0x1d0] sm:$0xff]
    %v1717 = vld [vmem:[#allocation5 + $0x1d8] sm:$0xff]
    %v1718 = vld [vmem:[#allocation5 + $0x1e0] sm:$0xff]
    %v1719 = vld [vmem:[#allocation5 + $0x1e8] sm:$0xff]
    %v1720 = vld [vmem:[#allocation5 + $0x1f0] sm:$0xff]
    %v1721 = vld [vmem:[#allocation5 + $0x1f8] sm:$0xff]
    %v1722 = vld [vmem:[#allocation5 + $0x200] sm:$0xff]
    %v1723 = vld [vmem:[#allocation5 + $0x208] sm:$0xff]
    %v1724 = vld [vmem:[#allocation5 + $0x210] sm:$0xff]
    %v1725 = vld [vmem:[#allocation5 + $0x218] sm:$0xff]
    %v1726 = vld [vmem:[#allocation5 + $0x220] sm:$0xff]
    %v1727 = vld [vmem:[#allocation5 + $0x228] sm:$0xff]
    %v1728 = vld [vmem:[#allocation5 + $0x230] sm:$0xff]
    %v1729 = vld [vmem:[#allocation5 + $0x238] sm:$0xff]
    %v1730 = vld [vmem:[#allocation5 + $0x240] sm:$0xff]
    %v1731 = vld [vmem:[#allocation5 + $0x248] sm:$0xff]
    %v1732 = vld [vmem:[#allocation5 + $0x250] sm:$0xff]
    %v1733 = vld [vmem:[#allocation5 + $0x258] sm:$0xff]
    %v1734 = vld [vmem:[#allocation5 + $0x260] sm:$0xff]
    %v1735 = vld [vmem:[#allocation5 + $0x268] sm:$0xff]
    %v1736 = vld [vmem:[#allocation5 + $0x270] sm:$0xff]
    %v1737 = vld [vmem:[#allocation5 + $0x278] sm:$0xff]
    %v1738 = vld [vmem:[#allocation5 + $0x280] sm:$0xff]
    %v1739 = vld [vmem:[#allocation5 + $0x288] sm:$0xff]
    %v1740 = vld [vmem:[#allocation5 + $0x290] sm:$0xff]
    %v1741 = vld [vmem:[#allocation5 + $0x298] sm:$0xff]
    %v1742 = vld [vmem:[#allocation5 + $0x2a0] sm:$0xff]
    %v1743 = vld [vmem:[#allocation5 + $0x2a8] sm:$0xff]
    %v1744 = vld [vmem:[#allocation5 + $0x2b0] sm:$0xff]
    %v1745 = vld [vmem:[#allocation5 + $0x2b8] sm:$0xff]
    %v1746 = vld [vmem:[#allocation5 + $0x2c0] sm:$0xff]
    %v1747 = vld [vmem:[#allocation5 + $0x2c8] sm:$0xff]
    %v1748 = vld [vmem:[#allocation5 + $0x2d0] sm:$0xff]
    %v1749 = vld [vmem:[#allocation5 + $0x2d8] sm:$0xff]
    %v1750 = vld [vmem:[#allocation5 + $0x2e0] sm:$0xff]
    %v1751 = vld [vmem:[#allocation5 + $0x2e8] sm:$0xff]
    %v1752 = vld [vmem:[#allocation5 + $0x2f0] sm:$0xff]
    %v1753 = vld [vmem:[#allocation5 + $0x2f8] sm:$0xff]
    %v1754 = vld [vmem:[#allocation5 + $0x300] sm:$0xff]
    %v1755 = vld [vmem:[#allocation5 + $0x308] sm:$0xff]
    %v1756 = vld [vmem:[#allocation5 + $0x310] sm:$0xff]
    %v1757 = vld [vmem:[#allocation5 + $0x318] sm:$0xff]
    %v1758 = vld [vmem:[#allocation5 + $0x320] sm:$0xff]
    %v1759 = vld [vmem:[#allocation5 + $0x328] sm:$0xff]
    %v1760 = vld [vmem:[#allocation5 + $0x330] sm:$0xff]
    %v1761 = vld [vmem:[#allocation5 + $0x338] sm:$0xff]
    %v1762 = vld [vmem:[#allocation5 + $0x340] sm:$0xff]
    %v1763 = vld [vmem:[#allocation5 + $0x348] sm:$0xff]
    %v1764 = vld [vmem:[#allocation5 + $0x350] sm:$0xff]
    %v1765 = vld [vmem:[#allocation5 + $0x358] sm:$0xff]
    %v1766 = vld [vmem:[#allocation5 + $0x360] sm:$0xff]
    %v1767 = vld [vmem:[#allocation5 + $0x368] sm:$0xff]
    %v1768 = vld [vmem:[#allocation5 + $0x370] sm:$0xff]
    %v1769 = vld [vmem:[#allocation5 + $0x378] sm:$0xff]
    %v1770 = vld [vmem:[#allocation5 + $0x380] sm:$0xff]
    %v1771 = vld [vmem:[#allocation5 + $0x388] sm:$0xff]
    %v1772 = vld [vmem:[#allocation5 + $0x390] sm:$0xff]
    %v1773 = vld [vmem:[#allocation5 + $0x398] sm:$0xff]
    %v1774 = vld [vmem:[#allocation5 + $0x3a0] sm:$0xff]
    %v1775 = vld [vmem:[#allocation5 + $0x3a8] sm:$0xff]
    %v1776 = vld [vmem:[#allocation5 + $0x3b0] sm:$0xff]
    %v1777 = vld [vmem:[#allocation5 + $0x3b8] sm:$0xff]
    %v1778 = vld [vmem:[#allocation5 + $0x3c0] sm:$0xff]
    %v1779 = vld [vmem:[#allocation5 + $0x3c8] sm:$0xff]
    %v1780 = vld [vmem:[#allocation5 + $0x3d0] sm:$0xff]
    %v1781 = vld [vmem:[#allocation5 + $0x3d8] sm:$0xff]
    %v1782 = vld [vmem:[#allocation5 + $0x3e0] sm:$0xff]
    %v1783 = vld [vmem:[#allocation5 + $0x3e8] sm:$0xff]
    %v1784 = vld [vmem:[#allocation5 + $0x3f0] sm:$0xff]
    %v1785 = vld [vmem:[#allocation5 + $0x3f8] sm:$0xff]
    %v1786 = vld [vmem:[%s4] sm:$0xf]
    %v1788 = vperm.slane %v1786, 0
    %v1789 = vperm.slane %v1786, 1
    %v1790 = vperm.slane %v1786, 2
    %v1791 = vperm.slane %v1786, 3
    %v1924 = vunpack.c.l.b16 %v1658
    %v1925 = vunpack.c.h.b16 %v1658
    %v1926 = vunpack.c.l.b16 %v1659
    %v1927 = vunpack.c.h.b16 %v1659
    %v1928 = vunpack.c.l.b16 %v1660
    %v1929 = vunpack.c.h.b16 %v1660
    %v1930 = vunpack.c.l.b16 %v1661
    %v1931 = vunpack.c.h.b16 %v1661
    %v1932 = vunpack.c.l.b16 %v1662
    %v1933 = vunpack.c.h.b16 %v1662
    %v1934 = vunpack.c.l.b16 %v1663
    %v1935 = vunpack.c.h.b16 %v1663
    %v1936 = vunpack.c.l.b16 %v1664
    %v1937 = vunpack.c.h.b16 %v1664
    %v1938 = vunpack.c.l.b16 %v1665
    %v1939 = vunpack.c.h.b16 %v1665
    %v1940 = vunpack.c.l.b16 %v1666
    %v1941 = vunpack.c.h.b16 %v1666
    %v1942 = vunpack.c.l.b16 %v1667
    %v1943 = vunpack.c.h.b16 %v1667
    %v1944 = vunpack.c.l.b16 %v1668
    %v1945 = vunpack.c.h.b16 %v1668
    %v1946 = vunpack.c.l.b16 %v1669
    %v1947 = vunpack.c.h.b16 %v1669
    %v1948 = vunpack.c.l.b16 %v1670
    %v1949 = vunpack.c.h.b16 %v1670
    %v1950 = vunpack.c.l.b16 %v1671
    %v1951 = vunpack.c.h.b16 %v1671
    %v1952 = vunpack.c.l.b16 %v1672
    %v1953 = vunpack.c.h.b16 %v1672
    %v1954 = vunpack.c.l.b16 %v1673
    %v1955 = vunpack.c.h.b16 %v1673
    %v1956 = vunpack.c.l.b16 %v1674
    %v1957 = vunpack.c.h.b16 %v1674
    %v1958 = vunpack.c.l.b16 %v1675
    %v1959 = vunpack.c.h.b16 %v1675
    %v1960 = vunpack.c.l.b16 %v1676
    %v1961 = vunpack.c.h.b16 %v1676
    %v1962 = vunpack.c.l.b16 %v1677
    %v1963 = vunpack.c.h.b16 %v1677
    %v1964 = vunpack.c.l.b16 %v1678
    %v1965 = vunpack.c.h.b16 %v1678
    %v1966 = vunpack.c.l.b16 %v1679
    %v1967 = vunpack.c.h.b16 %v1679
    %v1968 = vunpack.c.l.b16 %v1680
    %v1969 = vunpack.c.h.b16 %v1680
    %v1970 = vunpack.c.l.b16 %v1681
    %v1971 = vunpack.c.h.b16 %v1681
    %v1972 = vunpack.c.l.b16 %v1682
    %v1973 = vunpack.c.h.b16 %v1682
    %v1974 = vunpack.c.l.b16 %v1683
    %v1975 = vunpack.c.h.b16 %v1683
    %v1976 = vunpack.c.l.b16 %v1684
    %v1977 = vunpack.c.h.b16 %v1684
    %v1978 = vunpack.c.l.b16 %v1685
    %v1979 = vunpack.c.h.b16 %v1685
    %v1980 = vunpack.c.l.b16 %v1686
    %v1981 = vunpack.c.h.b16 %v1686
    %v1982 = vunpack.c.l.b16 %v1687
    %v1983 = vunpack.c.h.b16 %v1687
    %v1984 = vunpack.c.l.b16 %v1688
    %v1985 = vunpack.c.h.b16 %v1688
    %v1986 = vunpack.c.l.b16 %v1689
    %v1987 = vunpack.c.h.b16 %v1689
    %v1988 = vunpack.c.l.b16 %v1690
    %v1989 = vunpack.c.h.b16 %v1690
    %v1990 = vunpack.c.l.b16 %v1691
    %v1991 = vunpack.c.h.b16 %v1691
    %v1992 = vunpack.c.l.b16 %v1692
    %v1993 = vunpack.c.h.b16 %v1692
    %v1994 = vunpack.c.l.b16 %v1693
    %v1995 = vunpack.c.h.b16 %v1693
    %v1996 = vunpack.c.l.b16 %v1694
    %v1997 = vunpack.c.h.b16 %v1694
    %v1998 = vunpack.c.l.b16 %v1695
    %v1999 = vunpack.c.h.b16 %v1695
    %v2000 = vunpack.c.l.b16 %v1696
    %v2001 = vunpack.c.h.b16 %v1696
    %v2002 = vunpack.c.l.b16 %v1697
    %v2003 = vunpack.c.h.b16 %v1697
    %v2004 = vunpack.c.l.b16 %v1698
    %v2005 = vunpack.c.h.b16 %v1698
    %v2006 = vunpack.c.l.b16 %v1699
    %v2007 = vunpack.c.h.b16 %v1699
    %v2008 = vunpack.c.l.b16 %v1700
    %v2009 = vunpack.c.h.b16 %v1700
    %v2010 = vunpack.c.l.b16 %v1701
    %v2011 = vunpack.c.h.b16 %v1701
    %v2012 = vunpack.c.l.b16 %v1702
    %v2013 = vunpack.c.h.b16 %v1702
    %v2014 = vunpack.c.l.b16 %v1703
    %v2015 = vunpack.c.h.b16 %v1703
    %v2016 = vunpack.c.l.b16 %v1704
    %v2017 = vunpack.c.h.b16 %v1704
    %v2018 = vunpack.c.l.b16 %v1705
    %v2019 = vunpack.c.h.b16 %v1705
    %v2020 = vunpack.c.l.b16 %v1706
    %v2021 = vunpack.c.h.b16 %v1706
    %v2022 = vunpack.c.l.b16 %v1707
    %v2023 = vunpack.c.h.b16 %v1707
    %v2024 = vunpack.c.l.b16 %v1708
    %v2025 = vunpack.c.h.b16 %v1708
    %v2026 = vunpack.c.l.b16 %v1709
    %v2027 = vunpack.c.h.b16 %v1709
    %v2028 = vunpack.c.l.b16 %v1710
    %v2029 = vunpack.c.h.b16 %v1710
    %v2030 = vunpack.c.l.b16 %v1711
    %v2031 = vunpack.c.h.b16 %v1711
    %v2032 = vunpack.c.l.b16 %v1712
    %v2033 = vunpack.c.h.b16 %v1712
    %v2034 = vunpack.c.l.b16 %v1713
    %v2035 = vunpack.c.h.b16 %v1713
    %v2036 = vunpack.c.l.b16 %v1714
    %v2037 = vunpack.c.h.b16 %v1714
    %v2038 = vunpack.c.l.b16 %v1715
    %v2039 = vunpack.c.h.b16 %v1715
    %v2040 = vunpack.c.l.b16 %v1716
    %v2041 = vunpack.c.h.b16 %v1716
    %v2042 = vunpack.c.l.b16 %v1717
    %v2043 = vunpack.c.h.b16 %v1717
    %v2044 = vunpack.c.l.b16 %v1718
    %v2045 = vunpack.c.h.b16 %v1718
    %v2046 = vunpack.c.l.b16 %v1719
    %v2047 = vunpack.c.h.b16 %v1719
    %v2048 = vunpack.c.l.b16 %v1720
    %v2049 = vunpack.c.h.b16 %v1720
    %v2050 = vunpack.c.l.b16 %v1721
    %v2051 = vunpack.c.h.b16 %v1721
    %v2052 = vunpack.c.l.b16 %v1722
    %v2053 = vunpack.c.h.b16 %v1722
    %v2054 = vunpack.c.l.b16 %v1723
    %v2055 = vunpack.c.h.b16 %v1723
    %v2056 = vunpack.c.l.b16 %v1724
    %v2057 = vunpack.c.h.b16 %v1724
    %v2058 = vunpack.c.l.b16 %v1725
    %v2059 = vunpack.c.h.b16 %v1725
    %v2060 = vunpack.c.l.b16 %v1726
    %v2061 = vunpack.c.h.b16 %v1726
    %v2062 = vunpack.c.l.b16 %v1727
    %v2063 = vunpack.c.h.b16 %v1727
    %v2064 = vunpack.c.l.b16 %v1728
    %v2065 = vunpack.c.h.b16 %v1728
    %v2066 = vunpack.c.l.b16 %v1729
    %v2067 = vunpack.c.h.b16 %v1729
    %v2068 = vunpack.c.l.b16 %v1730
    %v2069 = vunpack.c.h.b16 %v1730
    %v2070 = vunpack.c.l.b16 %v1731
    %v2071 = vunpack.c.h.b16 %v1731
    %v2072 = vunpack.c.l.b16 %v1732
    %v2073 = vunpack.c.h.b16 %v1732
    %v2074 = vunpack.c.l.b16 %v1733
    %v2075 = vunpack.c.h.b16 %v1733
    %v2076 = vunpack.c.l.b16 %v1734
    %v2077 = vunpack.c.h.b16 %v1734
    %v2078 = vunpack.c.l.b16 %v1735
    %v2079 = vunpack.c.h.b16 %v1735
    %v2080 = vunpack.c.l.b16 %v1736
    %v2081 = vunpack.c.h.b16 %v1736
    %v2082 = vunpack.c.l.b16 %v1737
    %v2083 = vunpack.c.h.b16 %v1737
    %v2084 = vunpack.c.l.b16 %v1738
    %v2085 = vunpack.c.h.b16 %v1738
    %v2086 = vunpack.c.l.b16 %v1739
    %v2087 = vunpack.c.h.b16 %v1739
    %v2088 = vunpack.c.l.b16 %v1740
    %v2089 = vunpack.c.h.b16 %v1740
    %v2090 = vunpack.c.l.b16 %v1741
    %v2091 = vunpack.c.h.b16 %v1741
    %v2092 = vunpack.c.l.b16 %v1742
    %v2093 = vunpack.c.h.b16 %v1742
    %v2094 = vunpack.c.l.b16 %v1743
    %v2095 = vunpack.c.h.b16 %v1743
    %v2096 = vunpack.c.l.b16 %v1744
    %v2097 = vunpack.c.h.b16 %v1744
    %v2098 = vunpack.c.l.b16 %v1745
    %v2099 = vunpack.c.h.b16 %v1745
    %v2100 = vunpack.c.l.b16 %v1746
    %v2101 = vunpack.c.h.b16 %v1746
    %v2102 = vunpack.c.l.b16 %v1747
    %v2103 = vunpack.c.h.b16 %v1747
    %v2104 = vunpack.c.l.b16 %v1748
    %v2105 = vunpack.c.h.b16 %v1748
    %v2106 = vunpack.c.l.b16 %v1749
    %v2107 = vunpack.c.h.b16 %v1749
    %v2108 = vunpack.c.l.b16 %v1750
    %v2109 = vunpack.c.h.b16 %v1750
    %v2110 = vunpack.c.l.b16 %v1751
    %v2111 = vunpack.c.h.b16 %v1751
    %v2112 = vunpack.c.l.b16 %v1752
    %v2113 = vunpack.c.h.b16 %v1752
    %v2114 = vunpack.c.l.b16 %v1753
    %v2115 = vunpack.c.h.b16 %v1753
    %v2116 = vunpack.c.l.b16 %v1754
    %v2117 = vunpack.c.h.b16 %v1754
    %v2118 = vunpack.c.l.b16 %v1755
    %v2119 = vunpack.c.h.b16 %v1755
    %v2120 = vunpack.c.l.b16 %v1756
    %v2121 = vunpack.c.h.b16 %v1756
    %v2122 = vunpack.c.l.b16 %v1757
    %v2123 = vunpack.c.h.b16 %v1757
    %v2124 = vunpack.c.l.b16 %v1758
    %v2125 = vunpack.c.h.b16 %v1758
    %v2126 = vunpack.c.l.b16 %v1759
    %v2127 = vunpack.c.h.b16 %v1759
    %v2128 = vunpack.c.l.b16 %v1760
    %v2129 = vunpack.c.h.b16 %v1760
    %v2130 = vunpack.c.l.b16 %v1761
    %v2131 = vunpack.c.h.b16 %v1761
    %v2132 = vunpack.c.l.b16 %v1762
    %v2133 = vunpack.c.h.b16 %v1762
    %v2134 = vunpack.c.l.b16 %v1763
    %v2135 = vunpack.c.h.b16 %v1763
    %v2136 = vunpack.c.l.b16 %v1764
    %v2137 = vunpack.c.h.b16 %v1764
    %v2138 = vunpack.c.l.b16 %v1765
    %v2139 = vunpack.c.h.b16 %v1765
    %v2140 = vunpack.c.l.b16 %v1766
    %v2141 = vunpack.c.h.b16 %v1766
    %v2142 = vunpack.c.l.b16 %v1767
    %v2143 = vunpack.c.h.b16 %v1767
    %v2144 = vunpack.c.l.b16 %v1768
    %v2145 = vunpack.c.h.b16 %v1768
    %v2146 = vunpack.c.l.b16 %v1769
    %v2147 = vunpack.c.h.b16 %v1769
    %v2148 = vunpack.c.l.b16 %v1770
    %v2149 = vunpack.c.h.b16 %v1770
    %v2150 = vunpack.c.l.b16 %v1771
    %v2151 = vunpack.c.h.b16 %v1771
    %v2152 = vunpack.c.l.b16 %v1772
    %v2153 = vunpack.c.h.b16 %v1772
    %v2154 = vunpack.c.l.b16 %v1773
    %v2155 = vunpack.c.h.b16 %v1773
    %v2156 = vunpack.c.l.b16 %v1774
    %v2157 = vunpack.c.h.b16 %v1774
    %v2158 = vunpack.c.l.b16 %v1775
    %v2159 = vunpack.c.h.b16 %v1775
    %v2160 = vunpack.c.l.b16 %v1776
    %v2161 = vunpack.c.h.b16 %v1776
    %v2162 = vunpack.c.l.b16 %v1777
    %v2163 = vunpack.c.h.b16 %v1777
    %v2164 = vunpack.c.l.b16 %v1778
    %v2165 = vunpack.c.h.b16 %v1778
    %v2166 = vunpack.c.l.b16 %v1779
    %v2167 = vunpack.c.h.b16 %v1779
    %v2168 = vunpack.c.l.b16 %v1780
    %v2169 = vunpack.c.h.b16 %v1780
    %v2170 = vunpack.c.l.b16 %v1781
    %v2171 = vunpack.c.h.b16 %v1781
    %v2172 = vunpack.c.l.b16 %v1782
    %v2173 = vunpack.c.h.b16 %v1782
    %v2174 = vunpack.c.l.b16 %v1783
    %v2175 = vunpack.c.h.b16 %v1783
    %v2176 = vunpack.c.l.b16 %v1784
    %v2177 = vunpack.c.h.b16 %v1784
    %v2178 = vunpack.c.l.b16 %v1785
    %v2179 = vunpack.c.h.b16 %v1785
    %v2180 = vpack.c.b16 %v1928, %v1924
    %v2181 = vpack.c.b16 %v1929, %v1925
    %v2182 = vpack.c.b16 %v1930, %v1926
    %v2183 = vpack.c.b16 %v1931, %v1927
    %v2184 = vpack.c.b16 %v1936, %v1932
    %v2185 = vpack.c.b16 %v1937, %v1933
    %v2186 = vpack.c.b16 %v1938, %v1934
    %v2187 = vpack.c.b16 %v1939, %v1935
    %v2188 = vpack.c.b16 %v1944, %v1940
    %v2189 = vpack.c.b16 %v1945, %v1941
    %v2190 = vpack.c.b16 %v1946, %v1942
    %v2191 = vpack.c.b16 %v1947, %v1943
    %v2192 = vpack.c.b16 %v1952, %v1948
    %v2193 = vpack.c.b16 %v1953, %v1949
    %v2194 = vpack.c.b16 %v1954, %v1950
    %v2195 = vpack.c.b16 %v1955, %v1951
    %v2196 = vpack.c.b16 %v1960, %v1956
    %v2197 = vpack.c.b16 %v1961, %v1957
    %v2198 = vpack.c.b16 %v1962, %v1958
    %v2199 = vpack.c.b16 %v1963, %v1959
    %v2200 = vpack.c.b16 %v1968, %v1964
    %v2201 = vpack.c.b16 %v1969, %v1965
    %v2202 = vpack.c.b16 %v1970, %v1966
    %v2203 = vpack.c.b16 %v1971, %v1967
    %v2204 = vpack.c.b16 %v1976, %v1972
    %v2205 = vpack.c.b16 %v1977, %v1973
    %v2206 = vpack.c.b16 %v1978, %v1974
    %v2207 = vpack.c.b16 %v1979, %v1975
    %v2208 = vpack.c.b16 %v1984, %v1980
    %v2209 = vpack.c.b16 %v1985, %v1981
    %v2210 = vpack.c.b16 %v1986, %v1982
    %v2211 = vpack.c.b16 %v1987, %v1983
    %v2212 = vpack.c.b16 %v1992, %v1988
    %v2213 = vpack.c.b16 %v1993, %v1989
    %v2214 = vpack.c.b16 %v1994, %v1990
    %v2215 = vpack.c.b16 %v1995, %v1991
    %v2216 = vpack.c.b16 %v2000, %v1996
    %v2217 = vpack.c.b16 %v2001, %v1997
    %v2218 = vpack.c.b16 %v2002, %v1998
    %v2219 = vpack.c.b16 %v2003, %v1999
    %v2220 = vpack.c.b16 %v2008, %v2004
    %v2221 = vpack.c.b16 %v2009, %v2005
    %v2222 = vpack.c.b16 %v2010, %v2006
    %v2223 = vpack.c.b16 %v2011, %v2007
    %v2224 = vpack.c.b16 %v2016, %v2012
    %v2225 = vpack.c.b16 %v2017, %v2013
    %v2226 = vpack.c.b16 %v2018, %v2014
    %v2227 = vpack.c.b16 %v2019, %v2015
    %v2228 = vpack.c.b16 %v2024, %v2020
    %v2229 = vpack.c.b16 %v2025, %v2021
    %v2230 = vpack.c.b16 %v2026, %v2022
    %v2231 = vpack.c.b16 %v2027, %v2023
    %v2232 = vpack.c.b16 %v2032, %v2028
    %v2233 = vpack.c.b16 %v2033, %v2029
    %v2234 = vpack.c.b16 %v2034, %v2030
    %v2235 = vpack.c.b16 %v2035, %v2031
    %v2236 = vpack.c.b16 %v2040, %v2036
    %v2237 = vpack.c.b16 %v2041, %v2037
    %v2238 = vpack.c.b16 %v2042, %v2038
    %v2239 = vpack.c.b16 %v2043, %v2039
    %v2240 = vpack.c.b16 %v2048, %v2044
    %v2241 = vpack.c.b16 %v2049, %v2045
    %v2242 = vpack.c.b16 %v2050, %v2046
    %v2243 = vpack.c.b16 %v2051, %v2047
    %v2244 = vpack.c.b16 %v2056, %v2052
    %v2245 = vpack.c.b16 %v2057, %v2053
    %v2246 = vpack.c.b16 %v2058, %v2054
    %v2247 = vpack.c.b16 %v2059, %v2055
    %v2248 = vpack.c.b16 %v2064, %v2060
    %v2249 = vpack.c.b16 %v2065, %v2061
    %v2250 = vpack.c.b16 %v2066, %v2062
    %v2251 = vpack.c.b16 %v2067, %v2063
    %v2252 = vpack.c.b16 %v2072, %v2068
    %v2253 = vpack.c.b16 %v2073, %v2069
    %v2254 = vpack.c.b16 %v2074, %v2070
    %v2255 = vpack.c.b16 %v2075, %v2071
    %v2256 = vpack.c.b16 %v2080, %v2076
    %v2257 = vpack.c.b16 %v2081, %v2077
    %v2258 = vpack.c.b16 %v2082, %v2078
    %v2259 = vpack.c.b16 %v2083, %v2079
    %v2260 = vpack.c.b16 %v2088, %v2084
    %v2261 = vpack.c.b16 %v2089, %v2085
    %v2262 = vpack.c.b16 %v2090, %v2086
    %v2263 = vpack.c.b16 %v2091, %v2087
    %v2264 = vpack.c.b16 %v2096, %v2092
    %v2265 = vpack.c.b16 %v2097, %v2093
    %v2266 = vpack.c.b16 %v2098, %v2094
    %v2267 = vpack.c.b16 %v2099, %v2095
    %v2268 = vpack.c.b16 %v2104, %v2100
    %v2269 = vpack.c.b16 %v2105, %v2101
    %v2270 = vpack.c.b16 %v2106, %v2102
    %v2271 = vpack.c.b16 %v2107, %v2103
    %v2272 = vpack.c.b16 %v2112, %v2108
    %v2273 = vpack.c.b16 %v2113, %v2109
    %v2274 = vpack.c.b16 %v2114, %v2110
    %v2275 = vpack.c.b16 %v2115, %v2111
    %v2276 = vpack.c.b16 %v2120, %v2116
    %v2277 = vpack.c.b16 %v2121, %v2117
    %v2278 = vpack.c.b16 %v2122, %v2118
    %v2279 = vpack.c.b16 %v2123, %v2119
    %v2280 = vpack.c.b16 %v2128, %v2124
    %v2281 = vpack.c.b16 %v2129, %v2125
    %v2282 = vpack.c.b16 %v2130, %v2126
    %v2283 = vpack.c.b16 %v2131, %v2127
    %v2284 = vpack.c.b16 %v2136, %v2132
    %v2285 = vpack.c.b16 %v2137, %v2133
    %v2286 = vpack.c.b16 %v2138, %v2134
    %v2287 = vpack.c.b16 %v2139, %v2135
    %v2288 = vpack.c.b16 %v2144, %v2140
    %v2289 = vpack.c.b16 %v2145, %v2141
    %v2290 = vpack.c.b16 %v2146, %v2142
    %v2291 = vpack.c.b16 %v2147, %v2143
    %v2292 = vpack.c.b16 %v2152, %v2148
    %v2293 = vpack.c.b16 %v2153, %v2149
    %v2294 = vpack.c.b16 %v2154, %v2150
    %v2295 = vpack.c.b16 %v2155, %v2151
    %v2296 = vpack.c.b16 %v2160, %v2156
    %v2297 = vpack.c.b16 %v2161, %v2157
    %v2298 = vpack.c.b16 %v2162, %v2158
    %v2299 = vpack.c.b16 %v2163, %v2159
    %v2300 = vpack.c.b16 %v2168, %v2164
    %v2301 = vpack.c.b16 %v2169, %v2165
    %v2302 = vpack.c.b16 %v2170, %v2166
    %v2303 = vpack.c.b16 %v2171, %v2167
    %v2304 = vpack.c.b16 %v2176, %v2172
    %v2305 = vpack.c.b16 %v2177, %v2173
    %v2306 = vpack.c.b16 %v2178, %v2174
    %v2307 = vpack.c.b16 %v2179, %v2175
    %2436 = vmatpush.bf16.msra.mxu0 %v2208
    %2437 = vmatpush.bf16.msra.mxu0 %v2204
    %2438 = vmatpush.bf16.msra.mxu0 %v2200
    %2439 = vmatpush.bf16.msra.mxu0 %v2196
    %2440 = vmatpush.bf16.msra.mxu0 %v2192
    %2441 = vmatpush.bf16.msra.mxu0 %v2188
    %2442 = vmatpush.bf16.msra.mxu0 %v2184
    %2443 = vmatpush.bf16.msra.mxu0 %v2180
    %2444 = vmatmul.bf16.gmra.mxu0 %v1654
    %v2445 = vpop.f32.mrf.mxu0
    %v2446 = vadd.f32 %v1788, %v2445
    %v2447 = vpop.f32.mrf.mxu0
    %2448 = vdwg.mxu0
    %2449 = vmatpush.bf16.msra.mxu0 %v2240
    %2450 = vmatpush.bf16.msra.mxu0 %v2236
    %2451 = vmatpush.bf16.msra.mxu0 %v2232
    %2452 = vmatpush.bf16.msra.mxu0 %v2228
    %2453 = vmatpush.bf16.msra.mxu0 %v2224
    %2454 = vmatpush.bf16.msra.mxu0 %v2220
    %2455 = vmatpush.bf16.msra.mxu0 %v2216
    %2456 = vmatpush.bf16.msra.mxu0 %v2212
    %2457 = vmatmul.bf16.gmra.mxu0 %v1655
    %v2458 = vpop.f32.mrf.mxu0
    %v2459 = vadd.f32 %v2446, %v2458
    %v2460 = vpop.f32.mrf.mxu0
    %2461 = vdwg.mxu0
    %2462 = vmatpush.bf16.msra.mxu0 %v2272
    %2463 = vmatpush.bf16.msra.mxu0 %v2268
    %2464 = vmatpush.bf16.msra.mxu0 %v2264
    %2465 = vmatpush.bf16.msra.mxu0 %v2260
    %2466 = vmatpush.bf16.msra.mxu0 %v2256
    %2467 = vmatpush.bf16.msra.mxu0 %v2252
    %2468 = vmatpush.bf16.msra.mxu0 %v2248
    %2469 = vmatpush.bf16.msra.mxu0 %v2244
    %2470 = vmatmul.bf16.gmra.mxu0 %v1656
    %v2471 = vpop.f32.mrf.mxu0
    %v2472 = vadd.f32 %v2459, %v2471
    %v2473 = vpop.f32.mrf.mxu0
    %2474 = vdwg.mxu0
    %2475 = vmatpush.bf16.msra.mxu0 %v2304
    %2476 = vmatpush.bf16.msra.mxu0 %v2300
    %2477 = vmatpush.bf16.msra.mxu0 %v2296
    %2478 = vmatpush.bf16.msra.mxu0 %v2292
    %2479 = vmatpush.bf16.msra.mxu0 %v2288
    %2480 = vmatpush.bf16.msra.mxu0 %v2284
    %2481 = vmatpush.bf16.msra.mxu0 %v2280
    %2482 = vmatpush.bf16.msra.mxu0 %v2276
    %2483 = vmatmul.bf16.gmra.mxu0 %v1657
    %v2484 = vpop.f32.mrf.mxu0
    %v2485 = vadd.f32 %v2472, %v2484
    %v2486 = vpop.f32.mrf.mxu0
    %2487 = vdwg.mxu0
    %2488 = vmatpush.bf16.msra.mxu0 %v2209
    %2489 = vmatpush.bf16.msra.mxu0 %v2205
    %2490 = vmatpush.bf16.msra.mxu0 %v2201
    %2491 = vmatpush.bf16.msra.mxu0 %v2197
    %2492 = vmatpush.bf16.msra.mxu0 %v2193
    %2493 = vmatpush.bf16.msra.mxu0 %v2189
    %2494 = vmatpush.bf16.msra.mxu0 %v2185
    %2495 = vmatpush.bf16.msra.mxu0 %v2181
    %2496 = vmatmul.bf16.gmra.mxu0 %v1654
    %v2497 = vpop.f32.mrf.mxu0
    %v2498 = vadd.f32 %v1789, %v2497
    %v2499 = vpop.f32.mrf.mxu0
    %2500 = vdwg.mxu0
    %2501 = vmatpush.bf16.msra.mxu0 %v2241
    %2502 = vmatpush.bf16.msra.mxu0 %v2237
    %2503 = vmatpush.bf16.msra.mxu0 %v2233
    %2504 = vmatpush.bf16.msra.mxu0 %v2229
    %2505 = vmatpush.bf16.msra.mxu0 %v2225
    %2506 = vmatpush.bf16.msra.mxu0 %v2221
    %2507 = vmatpush.bf16.msra.mxu0 %v2217
    %2508 = vmatpush.bf16.msra.mxu0 %v2213
    %2509 = vmatmul.bf16.gmra.mxu0 %v1655
    %v2510 = vpop.f32.mrf.mxu0
    %v2511 = vadd.f32 %v2498, %v2510
    %v2512 = vpop.f32.mrf.mxu0
    %2513 = vdwg.mxu0
    %2514 = vmatpush.bf16.msra.mxu0 %v2273
    %2515 = vmatpush.bf16.msra.mxu0 %v2269
    %2516 = vmatpush.bf16.msra.mxu0 %v2265
    %2517 = vmatpush.bf16.msra.mxu0 %v2261
    %2518 = vmatpush.bf16.msra.mxu0 %v2257
    %2519 = vmatpush.bf16.msra.mxu0 %v2253
    %2520 = vmatpush.bf16.msra.mxu0 %v2249
    %2521 = vmatpush.bf16.msra.mxu0 %v2245
    %2522 = vmatmul.bf16.gmra.mxu0 %v1656
    %v2523 = vpop.f32.mrf.mxu0
    %v2524 = vadd.f32 %v2511, %v2523
    %v2525 = vpop.f32.mrf.mxu0
    %2526 = vdwg.mxu0
    %2527 = vmatpush.bf16.msra.mxu0 %v2305
    %2528 = vmatpush.bf16.msra.mxu0 %v2301
    %2529 = vmatpush.bf16.msra.mxu0 %v2297
    %2530 = vmatpush.bf16.msra.mxu0 %v2293
    %2531 = vmatpush.bf16.msra.mxu0 %v2289
    %2532 = vmatpush.bf16.msra.mxu0 %v2285
    %2533 = vmatpush.bf16.msra.mxu0 %v2281
    %2534 = vmatpush.bf16.msra.mxu0 %v2277
    %2535 = vmatmul.bf16.gmra.mxu0 %v1657
    %v2536 = vpop.f32.mrf.mxu0
    %v2537 = vadd.f32 %v2524, %v2536
    %v2538 = vpop.f32.mrf.mxu0
    %2539 = vdwg.mxu0
    %2540 = vmatpush.bf16.msra.mxu0 %v2210
    %2541 = vmatpush.bf16.msra.mxu0 %v2206
    %2542 = vmatpush.bf16.msra.mxu0 %v2202
    %2543 = vmatpush.bf16.msra.mxu0 %v2198
    %2544 = vmatpush.bf16.msra.mxu0 %v2194
    %2545 = vmatpush.bf16.msra.mxu0 %v2190
    %2546 = vmatpush.bf16.msra.mxu0 %v2186
    %2547 = vmatpush.bf16.msra.mxu0 %v2182
    %2548 = vmatmul.bf16.gmra.mxu0 %v1654
    %v2549 = vpop.f32.mrf.mxu0
    %v2550 = vadd.f32 %v1790, %v2549
    %v2551 = vpop.f32.mrf.mxu0
    %2552 = vdwg.mxu0
    %2553 = vmatpush.bf16.msra.mxu0 %v2242
    %2554 = vmatpush.bf16.msra.mxu0 %v2238
    %2555 = vmatpush.bf16.msra.mxu0 %v2234
    %2556 = vmatpush.bf16.msra.mxu0 %v2230
    %2557 = vmatpush.bf16.msra.mxu0 %v2226
    %2558 = vmatpush.bf16.msra.mxu0 %v2222
    %2559 = vmatpush.bf16.msra.mxu0 %v2218
    %2560 = vmatpush.bf16.msra.mxu0 %v2214
    %2561 = vmatmul.bf16.gmra.mxu0 %v1655
    %v2562 = vpop.f32.mrf.mxu0
    %v2563 = vadd.f32 %v2550, %v2562
    %v2564 = vpop.f32.mrf.mxu0
    %2565 = vdwg.mxu0
    %2566 = vmatpush.bf16.msra.mxu0 %v2274
    %2567 = vmatpush.bf16.msra.mxu0 %v2270
    %2568 = vmatpush.bf16.msra.mxu0 %v2266
    %2569 = vmatpush.bf16.msra.mxu0 %v2262
    %2570 = vmatpush.bf16.msra.mxu0 %v2258
    %2571 = vmatpush.bf16.msra.mxu0 %v2254
    %2572 = vmatpush.bf16.msra.mxu0 %v2250
    %2573 = vmatpush.bf16.msra.mxu0 %v2246
    %2574 = vmatmul.bf16.gmra.mxu0 %v1656
    %v2575 = vpop.f32.mrf.mxu0
    %v2576 = vadd.f32 %v2563, %v2575
    %v2577 = vpop.f32.mrf.mxu0
    %2578 = vdwg.mxu0
    %2579 = vmatpush.bf16.msra.mxu0 %v2306
    %2580 = vmatpush.bf16.msra.mxu0 %v2302
    %2581 = vmatpush.bf16.msra.mxu0 %v2298
    %2582 = vmatpush.bf16.msra.mxu0 %v2294
    %2583 = vmatpush.bf16.msra.mxu0 %v2290
    %2584 = vmatpush.bf16.msra.mxu0 %v2286
    %2585 = vmatpush.bf16.msra.mxu0 %v2282
    %2586 = vmatpush.bf16.msra.mxu0 %v2278
    %2587 = vmatmul.bf16.gmra.mxu0 %v1657
    %v2588 = vpop.f32.mrf.mxu0
    %v2589 = vadd.f32 %v2576, %v2588
    %v2590 = vpop.f32.mrf.mxu0
    %2591 = vdwg.mxu0
    %2592 = vmatpush.bf16.msra.mxu0 %v2211
    %2593 = vmatpush.bf16.msra.mxu0 %v2207
    %2594 = vmatpush.bf16.msra.mxu0 %v2203
    %2595 = vmatpush.bf16.msra.mxu0 %v2199
    %2596 = vmatpush.bf16.msra.mxu0 %v2195
    %2597 = vmatpush.bf16.msra.mxu0 %v2191
    %2598 = vmatpush.bf16.msra.mxu0 %v2187
    %2599 = vmatpush.bf16.msra.mxu0 %v2183
    %2600 = vmatmul.bf16.gmra.mxu0 %v1654
    %v2601 = vpop.f32.mrf.mxu0
    %v2602 = vadd.f32 %v1791, %v2601
    %v2603 = vpop.f32.mrf.mxu0
    %2604 = vdwg.mxu0
    %2605 = vmatpush.bf16.msra.mxu0 %v2243
    %2606 = vmatpush.bf16.msra.mxu0 %v2239
    %2607 = vmatpush.bf16.msra.mxu0 %v2235
    %2608 = vmatpush.bf16.msra.mxu0 %v2231
    %2609 = vmatpush.bf16.msra.mxu0 %v2227
    %2610 = vmatpush.bf16.msra.mxu0 %v2223
    %2611 = vmatpush.bf16.msra.mxu0 %v2219
    %2612 = vmatpush.bf16.msra.mxu0 %v2215
    %2613 = vmatmul.bf16.gmra.mxu0 %v1655
    %v2614 = vpop.f32.mrf.mxu0
    %v2615 = vadd.f32 %v2602, %v2614
    %v2616 = vpop.f32.mrf.mxu0
    %2617 = vdwg.mxu0
    %2618 = vmatpush.bf16.msra.mxu0 %v2275
    %2619 = vmatpush.bf16.msra.mxu0 %v2271
    %2620 = vmatpush.bf16.msra.mxu0 %v2267
    %2621 = vmatpush.bf16.msra.mxu0 %v2263
    %2622 = vmatpush.bf16.msra.mxu0 %v2259
    %2623 = vmatpush.bf16.msra.mxu0 %v2255
    %2624 = vmatpush.bf16.msra.mxu0 %v2251
    %2625 = vmatpush.bf16.msra.mxu0 %v2247
    %2626 = vmatmul.bf16.gmra.mxu0 %v1656
    %v2627 = vpop.f32.mrf.mxu0
    %v2628 = vadd.f32 %v2615, %v2627
    %v2629 = vpop.f32.mrf.mxu0
    %2630 = vdwg.mxu0
    %2631 = vmatpush.bf16.msra.mxu0 %v2307
    %2632 = vmatpush.bf16.msra.mxu0 %v2303
    %2633 = vmatpush.bf16.msra.mxu0 %v2299
    %2634 = vmatpush.bf16.msra.mxu0 %v2295
    %2635 = vmatpush.bf16.msra.mxu0 %v2291
    %2636 = vmatpush.bf16.msra.mxu0 %v2287
    %2637 = vmatpush.bf16.msra.mxu0 %v2283
    %2638 = vmatpush.bf16.msra.mxu0 %v2279
    %2639 = vmatmul.bf16.gmra.mxu0 %v1657
    %v2640 = vpop.f32.mrf.mxu0
    %v2641 = vadd.f32 %v2628, %v2640
    %v2642 = vpop.f32.mrf.mxu0
    %2643 = vdwg.mxu0
    %v2644 = vmax.f32 %v2485, 0.0
    %v2645 = vmax.f32 %v2537, 0.0
    %v2646 = vmax.f32 %v2589, 0.0
    %v2647 = vmax.f32 %v2641, 0.0
    %v2648 = vpack.c.bf16 %v2644, %v2644
    %v2649 = vpack.c.bf16 %v2645, %v2645
    %v2650 = vpack.c.bf16 %v2646, %v2646
    %v2651 = vpack.c.bf16 %v2647, %v2647
    %v2652 = vld [vmem:[%s5] sm:$0xf]
    %v2653 = vld [vmem:[%s5 + $0x4] sm:$0xf]
    %v2654 = vld [vmem:[%s5 + $0x8] sm:$0xf]
    %v2655 = vld [vmem:[%s5 + $0xc] sm:$0xf]
    %v2656 = vld [vmem:[%s5 + $0x10] sm:$0xf]
    %v2657 = vld [vmem:[%s5 + $0x14] sm:$0xf]
    %v2658 = vld [vmem:[%s5 + $0x18] sm:$0xf]
    %v2659 = vld [vmem:[%s5 + $0x1c] sm:$0xf]
    %v2660 = vld [vmem:[%s5 + $0x20] sm:$0xf]
    %v2661 = vld [vmem:[%s5 + $0x24] sm:$0xf]
    %v2662 = vld [vmem:[%s5 + $0x28] sm:$0xf]
    %v2663 = vld [vmem:[%s5 + $0x2c] sm:$0xf]
    %v2664 = vld [vmem:[%s5 + $0x30] sm:$0xf]
    %v2665 = vld [vmem:[%s5 + $0x34] sm:$0xf]
    %v2666 = vld [vmem:[%s5 + $0x38] sm:$0xf]
    %v2667 = vld [vmem:[%s5 + $0x3c] sm:$0xf]
    %v2668 = vld [vmem:[%s5 + $0x40] sm:$0xf]
    %v2669 = vld [vmem:[%s5 + $0x44] sm:$0xf]
    %v2670 = vld [vmem:[%s5 + $0x48] sm:$0xf]
    %v2671 = vld [vmem:[%s5 + $0x4c] sm:$0xf]
    %v2672 = vld [vmem:[%s5 + $0x50] sm:$0xf]
    %v2673 = vld [vmem:[%s5 + $0x54] sm:$0xf]
    %v2674 = vld [vmem:[%s5 + $0x58] sm:$0xf]
    %v2675 = vld [vmem:[%s5 + $0x5c] sm:$0xf]
    %v2676 = vld [vmem:[%s5 + $0x60] sm:$0xf]
    %v2677 = vld [vmem:[%s5 + $0x64] sm:$0xf]
    %v2678 = vld [vmem:[%s5 + $0x68] sm:$0xf]
    %v2679 = vld [vmem:[%s5 + $0x6c] sm:$0xf]
    %v2680 = vld [vmem:[%s5 + $0x70] sm:$0xf]
    %v2681 = vld [vmem:[%s5 + $0x74] sm:$0xf]
    %v2682 = vld [vmem:[%s5 + $0x78] sm:$0xf]
    %v2683 = vld [vmem:[%s5 + $0x7c] sm:$0xf]
    %v2684 = vld [vmem:[%s5 + $0x80] sm:$0xf]
    %v2685 = vld [vmem:[%s5 + $0x84] sm:$0xf]
    %v2686 = vld [vmem:[%s5 + $0x88] sm:$0xf]
    %v2687 = vld [vmem:[%s5 + $0x8c] sm:$0xf]
    %v2688 = vld [vmem:[%s5 + $0x90] sm:$0xf]
    %v2689 = vld [vmem:[%s5 + $0x94] sm:$0xf]
    %v2690 = vld [vmem:[%s5 + $0x98] sm:$0xf]
    %v2691 = vld [vmem:[%s5 + $0x9c] sm:$0xf]
    %v2692 = vld [vmem:[%s5 + $0xa0] sm:$0xf]
    %v2693 = vld [vmem:[%s5 + $0xa4] sm:$0xf]
    %v2694 = vld [vmem:[%s5 + $0xa8] sm:$0xf]
    %v2695 = vld [vmem:[%s5 + $0xac] sm:$0xf]
    %v2696 = vld [vmem:[%s5 + $0xb0] sm:$0xf]
    %v2697 = vld [vmem:[%s5 + $0xb4] sm:$0xf]
    %v2698 = vld [vmem:[%s5 + $0xb8] sm:$0xf]
    %v2699 = vld [vmem:[%s5 + $0xbc] sm:$0xf]
    %v2700 = vld [vmem:[%s5 + $0xc0] sm:$0xf]
    %v2701 = vld [vmem:[%s5 + $0xc4] sm:$0xf]
    %v2702 = vld [vmem:[%s5 + $0xc8] sm:$0xf]
    %v2703 = vld [vmem:[%s5 + $0xcc] sm:$0xf]
    %v2704 = vld [vmem:[%s5 + $0xd0] sm:$0xf]
    %v2705 = vld [vmem:[%s5 + $0xd4] sm:$0xf]
    %v2706 = vld [vmem:[%s5 + $0xd8] sm:$0xf]
    %v2707 = vld [vmem:[%s5 + $0xdc] sm:$0xf]
    %v2708 = vld [vmem:[%s5 + $0xe0] sm:$0xf]
    %v2709 = vld [vmem:[%s5 + $0xe4] sm:$0xf]
    %v2710 = vld [vmem:[%s5 + $0xe8] sm:$0xf]
    %v2711 = vld [vmem:[%s5 + $0xec] sm:$0xf]
    %v2712 = vld [vmem:[%s5 + $0xf0] sm:$0xf]
    %v2713 = vld [vmem:[%s5 + $0xf4] sm:$0xf]
    %v2714 = vld [vmem:[%s5 + $0xf8] sm:$0xf]
    %v2715 = vld [vmem:[%s5 + $0xfc] sm:$0xf]
    %v2716 = vld [vmem:[%s6] sm:$0x1]
    %v2718 = vperm.slane %v2716, 0
    %v2784 = vunpack.c.l.b16 %v2652
    %v2785 = vunpack.c.l.b16 %v2653
    %v2786 = vunpack.c.l.b16 %v2654
    %v2787 = vunpack.c.l.b16 %v2655
    %v2788 = vunpack.c.l.b16 %v2656
    %v2789 = vunpack.c.l.b16 %v2657
    %v2790 = vunpack.c.l.b16 %v2658
    %v2791 = vunpack.c.l.b16 %v2659
    %v2792 = vunpack.c.l.b16 %v2660
    %v2793 = vunpack.c.l.b16 %v2661
    %v2794 = vunpack.c.l.b16 %v2662
    %v2795 = vunpack.c.l.b16 %v2663
    %v2796 = vunpack.c.l.b16 %v2664
    %v2797 = vunpack.c.l.b16 %v2665
    %v2798 = vunpack.c.l.b16 %v2666
    %v2799 = vunpack.c.l.b16 %v2667
    %v2800 = vunpack.c.l.b16 %v2668
    %v2801 = vunpack.c.l.b16 %v2669
    %v2802 = vunpack.c.l.b16 %v2670
    %v2803 = vunpack.c.l.b16 %v2671
    %v2804 = vunpack.c.l.b16 %v2672
    %v2805 = vunpack.c.l.b16 %v2673
    %v2806 = vunpack.c.l.b16 %v2674
    %v2807 = vunpack.c.l.b16 %v2675
    %v2808 = vunpack.c.l.b16 %v2676
    %v2809 = vunpack.c.l.b16 %v2677
    %v2810 = vunpack.c.l.b16 %v2678
    %v2811 = vunpack.c.l.b16 %v2679
    %v2812 = vunpack.c.l.b16 %v2680
    %v2813 = vunpack.c.l.b16 %v2681
    %v2814 = vunpack.c.l.b16 %v2682
    %v2815 = vunpack.c.l.b16 %v2683
    %v2816 = vunpack.c.l.b16 %v2684
    %v2817 = vunpack.c.l.b16 %v2685
    %v2818 = vunpack.c.l.b16 %v2686
    %v2819 = vunpack.c.l.b16 %v2687
    %v2820 = vunpack.c.l.b16 %v2688
    %v2821 = vunpack.c.l.b16 %v2689
    %v2822 = vunpack.c.l.b16 %v2690
    %v2823 = vunpack.c.l.b16 %v2691
    %v2824 = vunpack.c.l.b16 %v2692
    %v2825 = vunpack.c.l.b16 %v2693
    %v2826 = vunpack.c.l.b16 %v2694
    %v2827 = vunpack.c.l.b16 %v2695
    %v2828 = vunpack.c.l.b16 %v2696
    %v2829 = vunpack.c.l.b16 %v2697
    %v2830 = vunpack.c.l.b16 %v2698
    %v2831 = vunpack.c.l.b16 %v2699
    %v2832 = vunpack.c.l.b16 %v2700
    %v2833 = vunpack.c.l.b16 %v2701
    %v2834 = vunpack.c.l.b16 %v2702
    %v2835 = vunpack.c.l.b16 %v2703
    %v2836 = vunpack.c.l.b16 %v2704
    %v2837 = vunpack.c.l.b16 %v2705
    %v2838 = vunpack.c.l.b16 %v2706
    %v2839 = vunpack.c.l.b16 %v2707
    %v2840 = vunpack.c.l.b16 %v2708
    %v2841 = vunpack.c.l.b16 %v2709
    %v2842 = vunpack.c.l.b16 %v2710
    %v2843 = vunpack.c.l.b16 %v2711
    %v2844 = vunpack.c.l.b16 %v2712
    %v2845 = vunpack.c.l.b16 %v2713
    %v2846 = vunpack.c.l.b16 %v2714
    %v2847 = vunpack.c.l.b16 %v2715
    %v2848 = vpack.c.b16 %v2785, %v2784
    %v2849 = vpack.c.b16 %v2787, %v2786
    %v2850 = vpack.c.b16 %v2789, %v2788
    %v2851 = vpack.c.b16 %v2791, %v2790
    %v2852 = vpack.c.b16 %v2793, %v2792
    %v2853 = vpack.c.b16 %v2795, %v2794
    %v2854 = vpack.c.b16 %v2797, %v2796
    %v2855 = vpack.c.b16 %v2799, %v2798
    %v2856 = vpack.c.b16 %v2801, %v2800
    %v2857 = vpack.c.b16 %v2803, %v2802
    %v2858 = vpack.c.b16 %v2805, %v2804
    %v2859 = vpack.c.b16 %v2807, %v2806
    %v2860 = vpack.c.b16 %v2809, %v2808
    %v2861 = vpack.c.b16 %v2811, %v2810
    %v2862 = vpack.c.b16 %v2813, %v2812
    %v2863 = vpack.c.b16 %v2815, %v2814
    %v2864 = vpack.c.b16 %v2817, %v2816
    %v2865 = vpack.c.b16 %v2819, %v2818
    %v2866 = vpack.c.b16 %v2821, %v2820
    %v2867 = vpack.c.b16 %v2823, %v2822
    %v2868 = vpack.c.b16 %v2825, %v2824
    %v2869 = vpack.c.b16 %v2827, %v2826
    %v2870 = vpack.c.b16 %v2829, %v2828
    %v2871 = vpack.c.b16 %v2831, %v2830
    %v2872 = vpack.c.b16 %v2833, %v2832
    %v2873 = vpack.c.b16 %v2835, %v2834
    %v2874 = vpack.c.b16 %v2837, %v2836
    %v2875 = vpack.c.b16 %v2839, %v2838
    %v2876 = vpack.c.b16 %v2841, %v2840
    %v2877 = vpack.c.b16 %v2843, %v2842
    %v2878 = vpack.c.b16 %v2845, %v2844
    %v2879 = vpack.c.b16 %v2847, %v2846
    %2912 = vmatpush.bf16.msra.mxu0 %v2855
    %2913 = vmatpush.bf16.msra.mxu0 %v2854
    %2914 = vmatpush.bf16.msra.mxu0 %v2853
    %2915 = vmatpush.bf16.msra.mxu0 %v2852
    %2916 = vmatpush.bf16.msra.mxu0 %v2851
    %2917 = vmatpush.bf16.msra.mxu0 %v2850
    %2918 = vmatpush.bf16.msra.mxu0 %v2849
    %2919 = vmatpush.bf16.msra.mxu0 %v2848
    %2920 = vmatmul.bf16.gmra.mxu0 %v2648
    %v2921 = vpop.f32.mrf.mxu0
    %v2922 = vadd.f32 %v2718, %v2921
    %v2923 = vpop.f32.mrf.mxu0
    %2924 = vdwg.mxu0
    %2925 = vmatpush.bf16.msra.mxu0 %v2863
    %2926 = vmatpush.bf16.msra.mxu0 %v2862
    %2927 = vmatpush.bf16.msra.mxu0 %v2861
    %2928 = vmatpush.bf16.msra.mxu0 %v2860
    %2929 = vmatpush.bf16.msra.mxu0 %v2859
    %2930 = vmatpush.bf16.msra.mxu0 %v2858
    %2931 = vmatpush.bf16.msra.mxu0 %v2857
    %2932 = vmatpush.bf16.msra.mxu0 %v2856
    %2933 = vmatmul.bf16.gmra.mxu0 %v2649
    %v2934 = vpop.f32.mrf.mxu0
    %v2935 = vadd.f32 %v2922, %v2934
    %v2936 = vpop.f32.mrf.mxu0
    %2937 = vdwg.mxu0
    %2938 = vmatpush.bf16.msra.mxu0 %v2871
    %2939 = vmatpush.bf16.msra.mxu0 %v2870
    %2940 = vmatpush.bf16.msra.mxu0 %v2869
    %2941 = vmatpush.bf16.msra.mxu0 %v2868
    %2942 = vmatpush.bf16.msra.mxu0 %v2867
    %2943 = vmatpush.bf16.msra.mxu0 %v2866
    %2944 = vmatpush.bf16.msra.mxu0 %v2865
    %2945 = vmatpush.bf16.msra.mxu0 %v2864
    %2946 = vmatmul.bf16.gmra.mxu0 %v2650
    %v2947 = vpop.f32.mrf.mxu0
    %v2948 = vadd.f32 %v2935, %v2947
    %v2949 = vpop.f32.mrf.mxu0
    %2950 = vdwg.mxu0
    %2951 = vmatpush.bf16.msra.mxu0 %v2879
    %2952 = vmatpush.bf16.msra.mxu0 %v2878
    %2953 = vmatpush.bf16.msra.mxu0 %v2877
    %2954 = vmatpush.bf16.msra.mxu0 %v2876
    %2955 = vmatpush.bf16.msra.mxu0 %v2875
    %2956 = vmatpush.bf16.msra.mxu0 %v2874
    %2957 = vmatpush.bf16.msra.mxu0 %v2873
    %2958 = vmatpush.bf16.msra.mxu0 %v2872
    %2959 = vmatmul.bf16.gmra.mxu0 %v2651
    %v2960 = vpop.f32.mrf.mxu0
    %v2961 = vadd.f32 %v2948, %v2960
    %v2962 = vpop.f32.mrf.mxu0
    %2963 = vdwg.mxu0
    %v2964 = vmax.f32 %v2961, 0.0
    %2965 = vst [vmem:[#allocation7] sm:$0xf] %v2964
    // Predicated region
    $region38: #{neural_network_forward.1} parent=1 // pred_check
      _
    $region39: #{neural_network_forward.1} parent=1 // pred_check_branch
      %2967 = sbr.rel (0) target = $region41
    $region40: #{neural_network_forward.1} parent=1 // pred_region
      %2969 = vsyncadd [#allocation4], 0
      %s2971 = sshll.u32 [#allocation7], 4
      %s2972 = int_to_ptr.vmem [resolvable:$true] %s2971
      %s2973 = sshll.u32 %s7, 4
      %s2974 = int_to_ptr.hbm [resolvable:$true] %s2973
      %2976 = dma.vmem_to_hbm [thread:$0]  %s2972, 64, %s2974, [#allocation4]
    $region41: #{neural_network_forward.1} parent=1 // pred_fallthru
      _
    // Predicated region
    $region42: #{neural_network_forward.1} parent=1 // pred_check
      _
    $region43: #{neural_network_forward.1} parent=1 // pred_check_branch
      %2978 = sbr.rel (0) target = $region45
    $region44: #{neural_network_forward.1} parent=1 // pred_region
      %2980 = dma.done [#allocation4], 64
    $region45: #{neural_network_forward.1} parent=1 // pred_fallthru
      _
    %2981 = vsyncpa [#allocation3], 1
    %2982 = vsyncpa [#allocation6], 1
    %2983 = vsyncpa [#allocation4], 1

</llo_original>
